<compile_context>
chip_gen: v7x
topology: tpu7x:2x2x1
jax: 0.10.0
libtpu: 0.0.40
codegen_flags: <defaults>
</compile_context>

<pallas_src>
import jax
import jax.numpy as jnp
from jax.experimental import pallas as pl
from jax.experimental.pallas import tpu as pltpu

# ----------------------------- configuration --------------------------------
NZ = 32                     # opt.nz
DOMAIN_NUM = 2              # opt.domain_num
NH = 512                    # fixed in the module (__init__: nh = 512)
NIN = NZ + DOMAIN_NUM
BN_EPS = 1e-5               # nn.BatchNorm2d default
LEAKY_SLOPE = 0.01          # nn.LeakyReLU default

# Slab row layout (all rows are length NH, f32):
#   rows [0, DOMAIN_NUM)            : w1d   (one-hot rows of conv1 weight)
#   rows DOMAIN_NUM + 0 .. + 5      : g1, be1, g2, be2, g3, be3
#   row  DOMAIN_NUM + 6             : wl    (final Linear weight)
#   row  DOMAIN_NUM + 7, element 0  : bl    (final Linear bias)
_SLAB_ROWS = DOMAIN_NUM + 8

# Whole-batch-resident design: ~8 KiB of live f32 temporaries per row plus
# ~1.1 MiB of weights.  Under the 48 MiB scoped-VMEM request below this is
# safe on every generation (v7x physical VMEM is only 64 MiB) up to ~4K rows.
_MAX_SINGLE_BLOCK_B = 4096
_VMEM_LIMIT_BYTES = 48 * 1024 * 1024


# ------------------------------ Pallas kernel --------------------------------
def _dis_kernel(x_ref, di_ref, w1x_ref, w2_ref, w3_ref, slab_ref, o_ref):
    """Whole DN_Dis_one_hot forward on one VMEM-resident block."""
    B = x_ref.shape[0]
    inv_m = jnp.float32(1.0 / B)   # BatchNorm2d reduces over N*H*W == B (H=W=1)

    R = DOMAIN_NUM
    g1 = slab_ref[R + 0:R + 1, :]
    be1 = slab_ref[R + 1:R + 2, :]
    g2 = slab_ref[R + 2:R + 3, :]
    be2 = slab_ref[R + 3:R + 4, :]
    g3 = slab_ref[R + 4:R + 5, :]
    be3 = slab_ref[R + 5:R + 6, :]
    wl = slab_ref[R + 6:R + 7, :]
    bl = slab_ref[R + 7:R + 8, 0:1]                                   # (1, 1)

    def bn_lrelu(y, g, be):
        # One-pass batch statistics (biased variance), fused into a single
        # per-channel scale/shift so the per-element epilogue is 2 VPU ops.
        mean = jnp.sum(y, axis=0, keepdims=True) * inv_m              # (1, NH)
        var = jnp.sum(y * y, axis=0, keepdims=True) * inv_m - mean * mean
        var = jnp.maximum(var, 0.0)                                   # guard cancellation
        scale = g * jax.lax.rsqrt(var + BN_EPS)                       # (1, NH)
        shift = be - mean * scale                                     # (1, NH)
        y = y * scale + shift
        return jnp.where(y > 0, y, LEAKY_SLOPE * y)                   # LeakyReLU(0.01)

    # ---- layer 1: Conv2d(nz + D, nh, 1) on concat(x, onehot) ---------------
    # Feature rows go through the MXU.  The one-hot contribution is just the
    # w1d row selected by each sample's domain index, added once (equivalent
    # to the concat + matmul, without a concat or a degenerate K=2 matmul).
    # Conv bias is dropped: it is cancelled by the BN mean subtraction.
    h = jnp.dot(x_ref[...].astype(jnp.bfloat16), w1x_ref[...],
                preferred_element_type=jnp.float32)                   # (B, NH) f32
    di = di_ref[...]                                                  # (B, 1) i32
    sel = slab_ref[0:1, :]                                            # w1d row 0
    for d in range(1, DOMAIN_NUM):                                    # static, D-1 selects
        sel = jnp.where(di == d, slab_ref[d:d + 1, :], sel)           # (B, NH)
    h = bn_lrelu(h + sel, g1, be1)

    # ---- layer 2: Conv2d(nh, nh, 1) + BN + LeakyReLU (bias dropped) --------
    h = jnp.dot(h.astype(jnp.bfloat16), w2_ref[...],
                preferred_element_type=jnp.float32)
    h = bn_lrelu(h, g2, be2)

    # ---- layer 3: Conv2d(nh, nh, 1) + BN + LeakyReLU (bias dropped) --------
    h = jnp.dot(h.astype(jnp.bfloat16), w3_ref[...],
                preferred_element_type=jnp.float32)
    h = bn_lrelu(h, g3, be3)

    # ---- nnSqueeze -> Linear(nh, 1) -> Sigmoid ------------------------------
    # N=1 output: multiply + lane reduction instead of a 99%-padded MXU pass.
    logit = jnp.sum(h * wl, axis=1, keepdims=True) + bl               # (B, 1)
    sig = pl.reciprocal(1.0 + jnp.exp(-logit), approx=True)           # divide on the EUP
    o_ref[...] = jnp.clip(sig, 0.0, 1.0)                              # keep strict [0,1]


# ------------------------------- wrapper --------------------------------------
def dn_dis_one_hot_forward(x, domain_index, params):
    """x: (B, nz, 1, 1) NCHW, domain_index: (B,) or (B, 1) int.  Returns (B, 1)."""
    B = x.shape[0]
    assert B <= _MAX_SINGLE_BLOCK_B, (
        "single-block whole-batch-resident kernel; larger B needs a B-grid "
        "with cross-tile BN statistics")
    x_flat = x.reshape(B, NZ).astype(jnp.float32)          # 1x1 spatial -> dense rows
    di = domain_index.reshape(B, 1).astype(jnp.int32)

    flops = int(2 * B * (NZ * NH + 2 * NH * NH + NH) + 20 * B * NH)
    transcendentals = int(B + 3 * NH)
    bytes_accessed = int(
        B * NZ * 4 + B * 4                                  # x, domain index
        + (NZ * NH + 2 * NH * NH) * 2                       # bf16 matmul weights
        + _SLAB_ROWS * NH * 4                               # packed small params
        + B * 4)                                            # output

    vmem = pl.BlockSpec(memory_space=pltpu.MemorySpace.VMEM)
    return pl.pallas_call(
        _dis_kernel,
        out_shape=jax.ShapeDtypeStruct((B, 1), jnp.float32),
        in_specs=[vmem] * 6,
        out_specs=vmem,
        compiler_params=pltpu.CompilerParams(vmem_limit_bytes=_VMEM_LIMIT_BYTES),
        cost_estimate=pl.CostEstimate(
            flops=flops, transcendentals=transcendentals,
            bytes_accessed=bytes_accessed),
    )(x_flat, di, params["w1x"], params["w2"], params["w3"], params["slab"])


# --------------------------- parameter creation -------------------------------
def init_params(key):
    def nrm(k, shape, scale=0.05):
        return scale * jax.random.normal(k, shape, dtype=jnp.float32)

    ks = jax.random.split(key, 5)
    # PyTorch layouts: Conv2d weight (Cout, Cin, 1, 1), Linear weight (out, in).
    # Conv biases are intentionally not created: they feed directly into
    # BatchNorm and are mathematically no-ops in the forward pass.
    w1 = nrm(ks[0], (NH, NIN, 1, 1))
    w2 = nrm(ks[1], (NH, NH, 1, 1))
    w3 = nrm(ks[2], (NH, NH, 1, 1))
    wl = nrm(ks[3], (1, NH))
    bl = nrm(ks[4], (1,))

    def conv1x1_to_mat(w):
        # (Cout, Cin, 1, 1) -> (Cin, Cout) matmul weight
        return jnp.transpose(w[:, :, 0, 0], (1, 0))

    w1m = conv1x1_to_mat(w1)                                   # (NIN, NH)
    ones = jnp.ones((1, NH), jnp.float32)
    zeros = jnp.zeros((1, NH), jnp.float32)
    bl_row = jnp.zeros((1, NH), jnp.float32).at[0, 0].set(bl[0])

    # Pack every tiny per-channel vector into ONE lane-dense f32 slab so the
    # kernel takes 6 inputs (6 DMAs) instead of 17.
    slab = jnp.concatenate(
        [
            w1m[NZ:],                 # rows 0..D-1 : one-hot rows of conv1 weight
            ones, zeros,              # g1, be1   (fresh BatchNorm2d: gamma=1, beta=0)
            ones, zeros,              # g2, be2
            ones, zeros,              # g3, be3
            wl,                       # final Linear weight
            bl_row,                   # final Linear bias in element [., 0]
        ],
        axis=0,
    ).astype(jnp.float32)                                      # (_SLAB_ROWS, NH)

    return {
        # big matmul weights stored bf16 (native MXU dtype, halves DMA bytes)
        "w1x": w1m[:NZ].astype(jnp.bfloat16),                  # (NZ, NH)
        "w2": conv1x1_to_mat(w2).astype(jnp.bfloat16),         # (NH, NH)
        "w3": conv1x1_to_mat(w3).astype(jnp.bfloat16),         # (NH, NH)
        "slab": slab,
    }


# ----------------------------------- main --------------------------------------
if __name__ == "__main__":
    key = jax.random.PRNGKey(0)
    k_x, k_d, k_p = jax.random.split(key, 3)

    B = 2
    x = jax.random.normal(k_x, (B, NZ, 1, 1), dtype=jnp.float32)     # (2, 32, 1, 1)
    domain_index = jax.random.randint(k_d, (B, 1), 0, DOMAIN_NUM, dtype=jnp.int32)
    params = init_params(k_p)

    y = jax.jit(dn_dis_one_hot_forward)(x, domain_index, params)
    jax.block_until_ready(y)

    assert y.shape == (B, 1), y.shape
    assert bool(jnp.all(jnp.isfinite(y)))
    assert bool(jnp.all((y >= 0.0) & (y <= 1.0)))     # sigmoid range
    print("KERNEL_OK")
</pallas_src>

<mosaic_0001>
module attributes {stable_mosaic.version = 11 : i64} {
  func.func @_dis_kernel(%arg0: memref<2x32xf32, #tpu.memory_space<vmem>>, %arg1: memref<2x1xi32, #tpu.memory_space<vmem>>, %arg2: memref<32x512xbf16, #tpu.memory_space<vmem>>, %arg3: memref<512x512xbf16, #tpu.memory_space<vmem>>, %arg4: memref<512x512xbf16, #tpu.memory_space<vmem>>, %arg5: memref<10x512xf32, #tpu.memory_space<vmem>>, %arg6: memref<2x1xf32, #tpu.memory_space<vmem>>) attributes {dimension_semantics = [], scalar_prefetch = 0 : i64, scratch_operands = 0 : i64, tpu.core_type = #tpu.core_type<tc>} {
    %c2 = arith.constant 2 : index
    %c0 = arith.constant 0 : index
    %0 = vector.load %arg5[%c2, %c0] : memref<10x512xf32, #tpu.memory_space<vmem>>, vector<1x512xf32>
    %c3 = arith.constant 3 : index
    %c0_0 = arith.constant 0 : index
    %1 = vector.load %arg5[%c3, %c0_0] : memref<10x512xf32, #tpu.memory_space<vmem>>, vector<1x512xf32>
    %c4 = arith.constant 4 : index
    %c0_1 = arith.constant 0 : index
    %2 = vector.load %arg5[%c4, %c0_1] : memref<10x512xf32, #tpu.memory_space<vmem>>, vector<1x512xf32>
    %c5 = arith.constant 5 : index
    %c0_2 = arith.constant 0 : index
    %3 = vector.load %arg5[%c5, %c0_2] : memref<10x512xf32, #tpu.memory_space<vmem>>, vector<1x512xf32>
    %c6 = arith.constant 6 : index
    %c0_3 = arith.constant 0 : index
    %4 = vector.load %arg5[%c6, %c0_3] : memref<10x512xf32, #tpu.memory_space<vmem>>, vector<1x512xf32>
    %c7 = arith.constant 7 : index
    %c0_4 = arith.constant 0 : index
    %5 = vector.load %arg5[%c7, %c0_4] : memref<10x512xf32, #tpu.memory_space<vmem>>, vector<1x512xf32>
    %c8 = arith.constant 8 : index
    %c0_5 = arith.constant 0 : index
    %6 = vector.load %arg5[%c8, %c0_5] : memref<10x512xf32, #tpu.memory_space<vmem>>, vector<1x512xf32>
    %c9 = arith.constant 9 : index
    %c0_6 = arith.constant 0 : index
    %7 = vector.load %arg5[%c9, %c0_6] : memref<10x512xf32, #tpu.memory_space<vmem>>, vector<1x1xf32>
    %c0_7 = arith.constant 0 : index
    %c0_8 = arith.constant 0 : index
    %8 = vector.load %arg0[%c0_7, %c0_8] : memref<2x32xf32, #tpu.memory_space<vmem>>, vector<2x32xf32>
    %9 = arith.truncf %8 : vector<2x32xf32> to vector<2x32xbf16>
    %c0_9 = arith.constant 0 : index
    %c0_10 = arith.constant 0 : index
    %10 = vector.load %arg2[%c0_9, %c0_10] : memref<32x512xbf16, #tpu.memory_space<vmem>>, vector<32x512xbf16>
    %cst = arith.constant dense<0.000000e+00> : vector<2x512xf32>
    %11 = tpu.matmul %9, %10, %cst {dimension_numbers = #tpu.dot_dimension_numbers<[1], [0], [0], [1], [0, 0, 1, 1], [], []>} : vector<2x32xbf16>, vector<32x512xbf16>, vector<2x512xf32> -> vector<2x512xf32>
    %c0_11 = arith.constant 0 : index
    %c0_12 = arith.constant 0 : index
    %12 = vector.load %arg1[%c0_11, %c0_12] : memref<2x1xi32, #tpu.memory_space<vmem>>, vector<2x1xi32>
    %c0_13 = arith.constant 0 : index
    %c0_14 = arith.constant 0 : index
    %13 = vector.load %arg5[%c0_13, %c0_14] : memref<10x512xf32, #tpu.memory_space<vmem>>, vector<1x512xf32>
    %c1_i32 = arith.constant 1 : i32
    %14 = vector.broadcast %c1_i32 : i32 to vector<2x1xi32>
    %15 = arith.cmpi eq, %12, %14 : vector<2x1xi32>
    %c1 = arith.constant 1 : index
    %c0_15 = arith.constant 0 : index
    %16 = vector.load %arg5[%c1, %c0_15] : memref<10x512xf32, #tpu.memory_space<vmem>>, vector<1x512xf32>
    %17 = vector.shape_cast %15 : vector<2x1xi1> to vector<2x1xi1>
    %18 = vector.broadcast %17 : vector<2x1xi1> to vector<2x512xi1>
    %19 = vector.shape_cast %16 : vector<1x512xf32> to vector<1x512xf32>
    %20 = vector.broadcast %19 : vector<1x512xf32> to vector<2x512xf32>
    %21 = vector.shape_cast %13 : vector<1x512xf32> to vector<1x512xf32>
    %22 = vector.broadcast %21 : vector<1x512xf32> to vector<2x512xf32>
    %23 = arith.select %18, %20, %22 : vector<2x512xi1>, vector<2x512xf32>
    %24 = arith.addf %11, %23 : vector<2x512xf32>
    %cst_16 = arith.constant dense<0.000000e+00> : vector<512xf32>
    %25 = vector.multi_reduction <add>, %24, %cst_16 [0] : vector<2x512xf32> to vector<512xf32>
    %26 = vector.shape_cast %25 : vector<512xf32> to vector<1x512xf32>
    %cst_17 = arith.constant 5.000000e-01 : f32
    %27 = vector.broadcast %cst_17 : f32 to vector<1x512xf32>
    %28 = arith.mulf %26, %27 : vector<1x512xf32>
    %29 = arith.mulf %24, %24 : vector<2x512xf32>
    %cst_18 = arith.constant dense<0.000000e+00> : vector<512xf32>
    %30 = vector.multi_reduction <add>, %29, %cst_18 [0] : vector<2x512xf32> to vector<512xf32>
    %31 = vector.shape_cast %30 : vector<512xf32> to vector<1x512xf32>
    %cst_19 = arith.constant 5.000000e-01 : f32
    %32 = vector.broadcast %cst_19 : f32 to vector<1x512xf32>
    %33 = arith.mulf %31, %32 : vector<1x512xf32>
    %34 = arith.mulf %28, %28 : vector<1x512xf32>
    %35 = arith.subf %33, %34 : vector<1x512xf32>
    %cst_20 = arith.constant 0.000000e+00 : f32
    %36 = vector.broadcast %cst_20 : f32 to vector<1x512xf32>
    %37 = arith.maximumf %35, %36 : vector<1x512xf32>
    %cst_21 = arith.constant 9.99999974E-6 : f32
    %38 = vector.broadcast %cst_21 : f32 to vector<1x512xf32>
    %39 = arith.addf %37, %38 : vector<1x512xf32>
    %40 = math.rsqrt %39 : vector<1x512xf32>
    %41 = arith.mulf %0, %40 : vector<1x512xf32>
    %42 = arith.mulf %28, %41 : vector<1x512xf32>
    %43 = arith.subf %1, %42 : vector<1x512xf32>
    %44 = vector.broadcast %41 : vector<1x512xf32> to vector<2x512xf32>
    %45 = arith.mulf %24, %44 : vector<2x512xf32>
    %46 = vector.broadcast %43 : vector<1x512xf32> to vector<2x512xf32>
    %47 = arith.addf %45, %46 : vector<2x512xf32>
    %cst_22 = arith.constant 0.000000e+00 : f32
    %48 = vector.broadcast %cst_22 : f32 to vector<2x512xf32>
    %49 = arith.cmpf ogt, %47, %48 : vector<2x512xf32>
    %cst_23 = arith.constant 0.00999999977 : f32
    %50 = vector.broadcast %cst_23 : f32 to vector<2x512xf32>
    %51 = arith.mulf %50, %47 : vector<2x512xf32>
    %52 = arith.select %49, %47, %51 : vector<2x512xi1>, vector<2x512xf32>
    %53 = arith.truncf %52 : vector<2x512xf32> to vector<2x512xbf16>
    %c0_24 = arith.constant 0 : index
    %c0_25 = arith.constant 0 : index
    %54 = vector.load %arg3[%c0_24, %c0_25] : memref<512x512xbf16, #tpu.memory_space<vmem>>, vector<512x512xbf16>
    %cst_26 = arith.constant dense<0.000000e+00> : vector<2x512xf32>
    %55 = tpu.matmul %53, %54, %cst_26 {dimension_numbers = #tpu.dot_dimension_numbers<[1], [0], [0], [1], [0, 0, 1, 1], [], []>} : vector<2x512xbf16>, vector<512x512xbf16>, vector<2x512xf32> -> vector<2x512xf32>
    %cst_27 = arith.constant dense<0.000000e+00> : vector<512xf32>
    %56 = vector.multi_reduction <add>, %55, %cst_27 [0] : vector<2x512xf32> to vector<512xf32>
    %57 = vector.shape_cast %56 : vector<512xf32> to vector<1x512xf32>
    %cst_28 = arith.constant 5.000000e-01 : f32
    %58 = vector.broadcast %cst_28 : f32 to vector<1x512xf32>
    %59 = arith.mulf %57, %58 : vector<1x512xf32>
    %60 = arith.mulf %55, %55 : vector<2x512xf32>
    %cst_29 = arith.constant dense<0.000000e+00> : vector<512xf32>
    %61 = vector.multi_reduction <add>, %60, %cst_29 [0] : vector<2x512xf32> to vector<512xf32>
    %62 = vector.shape_cast %61 : vector<512xf32> to vector<1x512xf32>
    %cst_30 = arith.constant 5.000000e-01 : f32
    %63 = vector.broadcast %cst_30 : f32 to vector<1x512xf32>
    %64 = arith.mulf %62, %63 : vector<1x512xf32>
    %65 = arith.mulf %59, %59 : vector<1x512xf32>
    %66 = arith.subf %64, %65 : vector<1x512xf32>
    %cst_31 = arith.constant 0.000000e+00 : f32
    %67 = vector.broadcast %cst_31 : f32 to vector<1x512xf32>
    %68 = arith.maximumf %66, %67 : vector<1x512xf32>
    %cst_32 = arith.constant 9.99999974E-6 : f32
    %69 = vector.broadcast %cst_32 : f32 to vector<1x512xf32>
    %70 = arith.addf %68, %69 : vector<1x512xf32>
    %71 = math.rsqrt %70 : vector<1x512xf32>
    %72 = arith.mulf %2, %71 : vector<1x512xf32>
    %73 = arith.mulf %59, %72 : vector<1x512xf32>
    %74 = arith.subf %3, %73 : vector<1x512xf32>
    %75 = vector.broadcast %72 : vector<1x512xf32> to vector<2x512xf32>
    %76 = arith.mulf %55, %75 : vector<2x512xf32>
    %77 = vector.broadcast %74 : vector<1x512xf32> to vector<2x512xf32>
    %78 = arith.addf %76, %77 : vector<2x512xf32>
    %cst_33 = arith.constant 0.000000e+00 : f32
    %79 = vector.broadcast %cst_33 : f32 to vector<2x512xf32>
    %80 = arith.cmpf ogt, %78, %79 : vector<2x512xf32>
    %cst_34 = arith.constant 0.00999999977 : f32
    %81 = vector.broadcast %cst_34 : f32 to vector<2x512xf32>
    %82 = arith.mulf %81, %78 : vector<2x512xf32>
    %83 = arith.select %80, %78, %82 : vector<2x512xi1>, vector<2x512xf32>
    %84 = arith.truncf %83 : vector<2x512xf32> to vector<2x512xbf16>
    %c0_35 = arith.constant 0 : index
    %c0_36 = arith.constant 0 : index
    %85 = vector.load %arg4[%c0_35, %c0_36] : memref<512x512xbf16, #tpu.memory_space<vmem>>, vector<512x512xbf16>
    %cst_37 = arith.constant dense<0.000000e+00> : vector<2x512xf32>
    %86 = tpu.matmul %84, %85, %cst_37 {dimension_numbers = #tpu.dot_dimension_numbers<[1], [0], [0], [1], [0, 0, 1, 1], [], []>} : vector<2x512xbf16>, vector<512x512xbf16>, vector<2x512xf32> -> vector<2x512xf32>
    %cst_38 = arith.constant dense<0.000000e+00> : vector<512xf32>
    %87 = vector.multi_reduction <add>, %86, %cst_38 [0] : vector<2x512xf32> to vector<512xf32>
    %88 = vector.shape_cast %87 : vector<512xf32> to vector<1x512xf32>
    %cst_39 = arith.constant 5.000000e-01 : f32
    %89 = vector.broadcast %cst_39 : f32 to vector<1x512xf32>
    %90 = arith.mulf %88, %89 : vector<1x512xf32>
    %91 = arith.mulf %86, %86 : vector<2x512xf32>
    %cst_40 = arith.constant dense<0.000000e+00> : vector<512xf32>
    %92 = vector.multi_reduction <add>, %91, %cst_40 [0] : vector<2x512xf32> to vector<512xf32>
    %93 = vector.shape_cast %92 : vector<512xf32> to vector<1x512xf32>
    %cst_41 = arith.constant 5.000000e-01 : f32
    %94 = vector.broadcast %cst_41 : f32 to vector<1x512xf32>
    %95 = arith.mulf %93, %94 : vector<1x512xf32>
    %96 = arith.mulf %90, %90 : vector<1x512xf32>
    %97 = arith.subf %95, %96 : vector<1x512xf32>
    %cst_42 = arith.constant 0.000000e+00 : f32
    %98 = vector.broadcast %cst_42 : f32 to vector<1x512xf32>
    %99 = arith.maximumf %97, %98 : vector<1x512xf32>
    %cst_43 = arith.constant 9.99999974E-6 : f32
    %100 = vector.broadcast %cst_43 : f32 to vector<1x512xf32>
    %101 = arith.addf %99, %100 : vector<1x512xf32>
    %102 = math.rsqrt %101 : vector<1x512xf32>
    %103 = arith.mulf %4, %102 : vector<1x512xf32>
    %104 = arith.mulf %90, %103 : vector<1x512xf32>
    %105 = arith.subf %5, %104 : vector<1x512xf32>
    %106 = vector.broadcast %103 : vector<1x512xf32> to vector<2x512xf32>
    %107 = arith.mulf %86, %106 : vector<2x512xf32>
    %108 = vector.broadcast %105 : vector<1x512xf32> to vector<2x512xf32>
    %109 = arith.addf %107, %108 : vector<2x512xf32>
    %cst_44 = arith.constant 0.000000e+00 : f32
    %110 = vector.broadcast %cst_44 : f32 to vector<2x512xf32>
    %111 = arith.cmpf ogt, %109, %110 : vector<2x512xf32>
    %cst_45 = arith.constant 0.00999999977 : f32
    %112 = vector.broadcast %cst_45 : f32 to vector<2x512xf32>
    %113 = arith.mulf %112, %109 : vector<2x512xf32>
    %114 = arith.select %111, %109, %113 : vector<2x512xi1>, vector<2x512xf32>
    %115 = vector.broadcast %6 : vector<1x512xf32> to vector<2x512xf32>
    %116 = arith.mulf %114, %115 : vector<2x512xf32>
    %cst_46 = arith.constant dense<0.000000e+00> : vector<2xf32>
    %117 = vector.multi_reduction <add>, %116, %cst_46 [1] : vector<2x512xf32> to vector<2xf32>
    %118 = vector.shape_cast %117 : vector<2xf32> to vector<2x1xf32>
    %119 = vector.broadcast %7 : vector<1x1xf32> to vector<2x1xf32>
    %120 = arith.addf %118, %119 : vector<2x1xf32>
    %cst_47 = arith.constant 0.000000e+00 : f32
    %121 = vector.broadcast %cst_47 : f32 to vector<2x1xf32>
    %122 = arith.subf %121, %120 : vector<2x1xf32>
    %123 = math.exp %122 : vector<2x1xf32>
    %cst_48 = arith.constant 1.000000e+00 : f32
    %124 = vector.broadcast %cst_48 : f32 to vector<2x1xf32>
    %125 = arith.addf %124, %123 : vector<2x1xf32>
    %126 = tpu.reciprocal %125 {approx = true} : vector<2x1xf32> -> vector<2x1xf32>
    %cst_49 = arith.constant 0.000000e+00 : f32
    %cst_50 = arith.constant 1.000000e+00 : f32
    %127 = vector.broadcast %cst_49 : f32 to vector<2x1xf32>
    %128 = arith.maximumf %127, %126 : vector<2x1xf32>
    %129 = vector.broadcast %cst_50 : f32 to vector<2x1xf32>
    %130 = arith.minimumf %129, %128 : vector<2x1xf32>
    %c0_51 = arith.constant 0 : index
    %c0_52 = arith.constant 0 : index
    %131 = vector.load %arg6[%c0_51, %c0_52] : memref<2x1xf32, #tpu.memory_space<vmem>>, vector<2x1xf32>
    tpu.vector_store %arg6[%c0_51, %c0_52], %130 {strides = array<i32>} : memref<2x1xf32, #tpu.memory_space<vmem>>, vector<2x1xf32>,
    return
  }
}

</mosaic_0001>

<llo_original>
// kernel: dn_dis_one_hot_forward.1
$region0: #{dn_dis_one_hot_forward.1}
  #allocation0 [shape = 'u32[]', space=smem, size = 0x4, offset = 0x4, fixed_abs, tag = 'smem constant byte address 0x4 - core index']
  #allocation1 [shape = 'u32[144,128]{1,0:T(1,128)}', space=vmem, size = 0x12000, scoped, tag = 'internal scratch']
  %s0 = inlined_call_operand.vmem [shape: f32[2,32], index: 0, kind: input, shape index: {}]
  %s1 = inlined_call_operand.vmem [shape: s32[2,1], index: 1, kind: input, shape index: {}]
  %s2 = inlined_call_operand.hbm [shape: bf16[32,512], index: 2, kind: input, shape index: {}]
  %s3 = inlined_call_operand.hbm [shape: bf16[512,512], index: 3, kind: input, shape index: {}]
  %s4 = inlined_call_operand.hbm [shape: bf16[512,512], index: 4, kind: input, shape index: {}]
  %s5 = inlined_call_operand.hbm [shape: f32[10,512], index: 5, kind: input, shape index: {}]
  %s6 = inlined_call_operand.vmem [shape: f32[2,1], index: 6, kind: output, shape index: {}]
  %s7 = sld [smem:[#allocation0]]
  $region50: #{dn_dis_one_hot_forward.1} parent=0
    _
  %s9 = ssub.s32 1, %s7
  %s10 = scalar_select 0, %s9, %s7
  $region1: #{dn_dis_one_hot_forward.1} parent=0
    #allocation2 [shape = 'u8[32768]{0}', space=vmem, size = 0x8000, scoped, tag = 'input window, operand 2, single buffered']
    #allocation3 [shape = 's32[1]{0}', space=sflag, size = 0x4, scoped, tag = 'scoped memory for dn_dis_one_hot_forward.1']
    #allocation4 [shape = 'u8[524288]{0}', space=vmem, size = 0x80000, scoped, tag = 'input window, operand 3, single buffered']
    #allocation5 [shape = 's32[1]{0}', space=sflag, size = 0x4, scoped, tag = 'scoped memory for dn_dis_one_hot_forward.1']
    #allocation6 [shape = 'u8[524288]{0}', space=vmem, size = 0x80000, scoped, tag = 'input window, operand 4, single buffered']
    #allocation7 [shape = 'u8[32768]{0}', space=vmem, size = 0x8000, scoped, tag = 'input window, operand 5, single buffered']
    #allocation8 [shape = 's32[1]{0}', space=sflag, size = 0x4, scoped, tag = 'scoped memory for dn_dis_one_hot_forward.1']
    %11 = vsyncpa [#allocation3], 0
    %12 = vsyncpa [#allocation5], 0
    %13 = vsyncpa [#allocation8], 0
    // Predicated region
    $region2: #{dn_dis_one_hot_forward.1} parent=1 // pred_check
      _
    $region3: #{dn_dis_one_hot_forward.1} parent=1 // pred_check_branch
      %15 = sbr.rel (0) target = $region5
    $region4: #{dn_dis_one_hot_forward.1} parent=1 // pred_region
      _
    $region5: #{dn_dis_one_hot_forward.1} parent=1 // pred_fallthru
      _
    // Predicated region
    $region6: #{dn_dis_one_hot_forward.1} parent=1 // pred_check
      _
    $region7: #{dn_dis_one_hot_forward.1} parent=1 // pred_check_branch
      %17 = sbr.rel (0) target = $region9
    $region8: #{dn_dis_one_hot_forward.1} parent=1 // pred_region
      _
    $region9: #{dn_dis_one_hot_forward.1} parent=1 // pred_fallthru
      _
    // Predicated region
    $region10: #{dn_dis_one_hot_forward.1} parent=1 // pred_check
      _
    $region11: #{dn_dis_one_hot_forward.1} parent=1 // pred_check_branch
      %19 = sbr.rel (0) target = $region13
    $region12: #{dn_dis_one_hot_forward.1} parent=1 // pred_region
      %s21 = ssub.s32 1024, 1024
      %22 = vsyncadd [#allocation3], %s21
      %s23 = sshll.u32 [#allocation2], 4
      %s24 = int_to_ptr.vmem [resolvable:$true] %s23
      %29 = dma.hbm_to_vmem [thread:$0]  %s2, 1024, %s24, [#allocation3], 256, 256, 16
    $region13: #{dn_dis_one_hot_forward.1} parent=1 // pred_fallthru
      _
    // Predicated region
    $region14: #{dn_dis_one_hot_forward.1} parent=1 // pred_check
      _
    $region15: #{dn_dis_one_hot_forward.1} parent=1 // pred_check_branch
      %31 = sbr.rel (0) target = $region17
    $region16: #{dn_dis_one_hot_forward.1} parent=1 // pred_region
      %s33 = ssub.s32 16384, 16384
      %34 = vsyncadd [#allocation5], %s33
      %s35 = sshll.u32 [#allocation4], 4
      %s36 = int_to_ptr.vmem [resolvable:$true] %s35
      %41 = dma.hbm_to_vmem [thread:$0]  %s3, 16384, %s36, [#allocation5], 256, 256, 16
    $region17: #{dn_dis_one_hot_forward.1} parent=1 // pred_fallthru
      _
    // Predicated region
    $region18: #{dn_dis_one_hot_forward.1} parent=1 // pred_check
      _
    $region19: #{dn_dis_one_hot_forward.1} parent=1 // pred_check_branch
      %43 = sbr.rel (0) target = $region21
    $region20: #{dn_dis_one_hot_forward.1} parent=1 // pred_region
      %s45 = ssub.s32 16384, 16384
      %46 = vsyncadd [#allocation5], %s45
      %s47 = sshll.u32 [#allocation6], 4
      %s48 = int_to_ptr.vmem [resolvable:$true] %s47
      %53 = dma.hbm_to_vmem [thread:$0]  %s4, 16384, %s48, [#allocation5], 256, 256, 16
    $region21: #{dn_dis_one_hot_forward.1} parent=1 // pred_fallthru
      _
    // Predicated region
    $region22: #{dn_dis_one_hot_forward.1} parent=1 // pred_check
      _
    $region23: #{dn_dis_one_hot_forward.1} parent=1 // pred_check_branch
      %55 = sbr.rel (0) target = $region25
    $region24: #{dn_dis_one_hot_forward.1} parent=1 // pred_region
      %s57 = ssub.s32 1024, 1024
      %58 = vsyncadd [#allocation8], %s57
      %s59 = sshll.u32 [#allocation7], 4
      %s60 = int_to_ptr.vmem [resolvable:$true] %s59
      %65 = dma.hbm_to_vmem [thread:$0]  %s5, 1024, %s60, [#allocation8], 512, 512, 32
    $region25: #{dn_dis_one_hot_forward.1} parent=1 // pred_fallthru
      _
    // Predicated region
    $region26: #{dn_dis_one_hot_forward.1} parent=1 // pred_check
      _
    $region27: #{dn_dis_one_hot_forward.1} parent=1 // pred_check_branch
      %67 = sbr.rel (0) target = $region29
    $region28: #{dn_dis_one_hot_forward.1} parent=1 // pred_region
      %68 = dma.done [#allocation3], 1024
    $region29: #{dn_dis_one_hot_forward.1} parent=1 // pred_fallthru
      _
    // Predicated region
    $region30: #{dn_dis_one_hot_forward.1} parent=1 // pred_check
      _
    $region31: #{dn_dis_one_hot_forward.1} parent=1 // pred_check_branch
      %70 = sbr.rel (0) target = $region33
    $region32: #{dn_dis_one_hot_forward.1} parent=1 // pred_region
      %71 = dma.done [#allocation5], 16384
    $region33: #{dn_dis_one_hot_forward.1} parent=1 // pred_fallthru
      _
    // Predicated region
    $region34: #{dn_dis_one_hot_forward.1} parent=1 // pred_check
      _
    $region35: #{dn_dis_one_hot_forward.1} parent=1 // pred_check_branch
      %73 = sbr.rel (0) target = $region37
    $region36: #{dn_dis_one_hot_forward.1} parent=1 // pred_region
      %74 = dma.done [#allocation5], 16384
    $region37: #{dn_dis_one_hot_forward.1} parent=1 // pred_fallthru
      _
    // Predicated region
    $region38: #{dn_dis_one_hot_forward.1} parent=1 // pred_check
      _
    $region39: #{dn_dis_one_hot_forward.1} parent=1 // pred_check_branch
      %76 = sbr.rel (0) target = $region41
    $region40: #{dn_dis_one_hot_forward.1} parent=1 // pred_region
      %77 = dma.done [#allocation8], 1024
    $region41: #{dn_dis_one_hot_forward.1} parent=1 // pred_fallthru
      _
    %s79 = scalar_lea.vmem [#allocation7], 2
    %v80 = vld [vmem:[%s79] ss:$8 sm:$0xf]
    %s81 = scalar_lea.vmem [#allocation7], 3
    %v82 = vld [vmem:[%s81] ss:$8 sm:$0xf]
    %s83 = scalar_lea.vmem [#allocation7], 4
    %v84 = vld [vmem:[%s83] ss:$8 sm:$0xf]
    %s85 = scalar_lea.vmem [#allocation7], 5
    %v86 = vld [vmem:[%s85] ss:$8 sm:$0xf]
    %s87 = scalar_lea.vmem [#allocation7], 6
    %v88 = vld [vmem:[%s87] ss:$8 sm:$0xf]
    %s89 = scalar_lea.vmem [#allocation7], 7
    %v90 = vld [vmem:[%s89] ss:$8 sm:$0xf]
    %s91 = scalar_lea.vmem [#allocation7], 32
    %v92 = vld [vmem:[%s91] ss:$8 sm:$0xf]
    %v93 = vld [vmem:[#allocation7 + $0x21] ss:$0 sm:$0xff]
    %v94 = vld [vmem:[%s0] sm:$0x3]
    %v95 = vpack.c.bf16 %v94, %v94
    %v96 = vld [vmem:[#allocation2] sm:$0xff]
    %v97 = vld [vmem:[#allocation2 + $0x8] sm:$0xff]
    %v98 = vld [vmem:[#allocation2 + $0x10] sm:$0xff]
    %v99 = vld [vmem:[#allocation2 + $0x18] sm:$0xff]
    %v100 = vld [vmem:[#allocation2 + $0x20] sm:$0xff]
    %v101 = vld [vmem:[#allocation2 + $0x28] sm:$0xff]
    %v102 = vld [vmem:[#allocation2 + $0x30] sm:$0xff]
    %v103 = vld [vmem:[#allocation2 + $0x38] sm:$0xff]
    %v104 = vld [vmem:[%s1] sm:$0x3]
    %v105 = vld [vmem:[#allocation7] ss:$8 sm:$0xf]
    %vm106 = vcmp.eq.s32.totalorder %v104, 1
    %s107 = scalar_lea.vmem [#allocation7], 1
    %v108 = vld [vmem:[%s107] ss:$8 sm:$0xf]
    %v109 = vsel %vm106, 1, 0
    %110 = vset.pattern.permute.xlu0 0
    %111 = vperm.xlu0 %110, %v109
    %v112 = vpop.permute.xlu0 %111
    %vm113 = vcmp.eq.s32.totalorder %v112, 1
    %v115 = vlaneseq
    %v116 = vshrl.u32 %v115, 7
    %v117 = vsub.s32 0, %v116
    %v118 = vrot.slane %v108, %v117
    %v119 = vlaneseq
    %v120 = vshrl.u32 %v119, 7
    %v121 = vsub.s32 1, %v120
    %v122 = vrot.slane %v108, %v121
    %v123 = vlaneseq
    %v124 = vshrl.u32 %v123, 7
    %v125 = vsub.s32 2, %v124
    %v126 = vrot.slane %v108, %v125
    %v127 = vlaneseq
    %v128 = vshrl.u32 %v127, 7
    %v129 = vsub.s32 3, %v128
    %v130 = vrot.slane %v108, %v129
    %v136 = vlaneseq
    %v137 = vshrl.u32 %v136, 7
    %v138 = vsub.s32 0, %v137
    %v139 = vrot.slane %v105, %v138
    %v140 = vlaneseq
    %v141 = vshrl.u32 %v140, 7
    %v142 = vsub.s32 1, %v141
    %v143 = vrot.slane %v105, %v142
    %v144 = vlaneseq
    %v145 = vshrl.u32 %v144, 7
    %v146 = vsub.s32 2, %v145
    %v147 = vrot.slane %v105, %v146
    %v148 = vlaneseq
    %v149 = vshrl.u32 %v148, 7
    %v150 = vsub.s32 3, %v149
    %v151 = vrot.slane %v105, %v150
    %v156 = vsel %vm113, %v118, %v139
    %v157 = vsel %vm113, %v122, %v143
    %v158 = vsel %vm113, %v126, %v147
    %v159 = vsel %vm113, %v130, %v151
    %v168 = vunpack.c.l.b16 %v96
    %v169 = vunpack.c.h.b16 %v96
    %v170 = vunpack.c.l.b16 %v97
    %v171 = vunpack.c.h.b16 %v97
    %v172 = vunpack.c.l.b16 %v98
    %v173 = vunpack.c.h.b16 %v98
    %v174 = vunpack.c.l.b16 %v99
    %v175 = vunpack.c.h.b16 %v99
    %v176 = vunpack.c.l.b16 %v100
    %v177 = vunpack.c.h.b16 %v100
    %v178 = vunpack.c.l.b16 %v101
    %v179 = vunpack.c.h.b16 %v101
    %v180 = vunpack.c.l.b16 %v102
    %v181 = vunpack.c.h.b16 %v102
    %v182 = vunpack.c.l.b16 %v103
    %v183 = vunpack.c.h.b16 %v103
    %v184 = vpack.c.b16 %v172, %v168
    %v185 = vpack.c.b16 %v173, %v169
    %v186 = vpack.c.b16 %v174, %v170
    %v187 = vpack.c.b16 %v175, %v171
    %v188 = vpack.c.b16 %v180, %v176
    %v189 = vpack.c.b16 %v181, %v177
    %v190 = vpack.c.b16 %v182, %v178
    %v191 = vpack.c.b16 %v183, %v179
    %vm200 = vcmask 261120
    %v202 = vsel %vm200, %v95, 0
    %204 = vmatprep.subr.bf16.mxu0 %v185
    %205 = vmatpush1.bf16.msra.mxu0 %v184
    %206 = vmatprep.subr.bf16.mxu0 %v189
    %207 = vmatpush1.bf16.msra.mxu0 %v188
    %208 = vmatprep.subr.bf16.mxu0 0
    %209 = vmatpush1.bf16.msra.mxu0 0
    %210 = vmatprep.subr.bf16.mxu0 0
    %211 = vmatpush1.bf16.msra.mxu0 0
    %212 = vmatprep.subr.bf16.mxu0 0
    %213 = vmatpush1.bf16.msra.mxu0 0
    %214 = vmatprep.subr.bf16.mxu0 0
    %215 = vmatpush1.bf16.msra.mxu0 0
    %216 = vmatprep.subr.bf16.mxu0 0
    %217 = vmatpush1.bf16.msra.mxu0 0
    %218 = vmatprep.subr.bf16.mxu0 0
    %219 = vmatpush1.bf16.msra.mxu0 0
    %220 = vmatprep.subr.bf16.mxu0 0
    %221 = vmatpush1.bf16.msra.mxu0 0
    %222 = vmatprep.subr.bf16.mxu0 0
    %223 = vmatpush1.bf16.msra.mxu0 0
    %224 = vmatprep.subr.bf16.mxu0 0
    %225 = vmatpush1.bf16.msra.mxu0 0
    %226 = vmatprep.subr.bf16.mxu0 0
    %227 = vmatpush1.bf16.msra.mxu0 0
    %228 = vmatprep.subr.bf16.mxu0 0
    %229 = vmatpush1.bf16.msra.mxu0 0
    %230 = vmatprep.subr.bf16.mxu0 0
    %231 = vmatpush1.bf16.msra.mxu0 0
    %232 = vmatprep.subr.bf16.mxu0 0
    %233 = vmatpush1.bf16.msra.mxu0 0
    %234 = vmatprep.subr.bf16.mxu0 0
    %235 = vmatpush1.bf16.msra.mxu0 0
    %236 = vmatprep.mubr.bf16.mxu0 0
    %237 = vmatmul.mubr.bf16.gmra.mrb[0].mxu0 %v202
    %v238 = vpop.f32.mrb[0].mxu0
    %v239 = vadd.f32 %v156, %v238
    %v240 = vpop.f32.mrb[0].mxu0
    %v241 = vadd.f32 %v157, %v240
    %v242 = vpop.f32.mrb[0].mxu0
    %v243 = vpop.f32.mrb[0].mxu0
    %244 = vdwg.mxu0
    %245 = vmatprep.subr.bf16.mxu0 %v187
    %246 = vmatpush1.bf16.msra.mxu0 %v186
    %247 = vmatprep.subr.bf16.mxu0 %v191
    %248 = vmatpush1.bf16.msra.mxu0 %v190
    %249 = vmatprep.subr.bf16.mxu0 0
    %250 = vmatpush1.bf16.msra.mxu0 0
    %251 = vmatprep.subr.bf16.mxu0 0
    %252 = vmatpush1.bf16.msra.mxu0 0
    %253 = vmatprep.subr.bf16.mxu0 0
    %254 = vmatpush1.bf16.msra.mxu0 0
    %255 = vmatprep.subr.bf16.mxu0 0
    %256 = vmatpush1.bf16.msra.mxu0 0
    %257 = vmatprep.subr.bf16.mxu0 0
    %258 = vmatpush1.bf16.msra.mxu0 0
    %259 = vmatprep.subr.bf16.mxu0 0
    %260 = vmatpush1.bf16.msra.mxu0 0
    %261 = vmatprep.subr.bf16.mxu0 0
    %262 = vmatpush1.bf16.msra.mxu0 0
    %263 = vmatprep.subr.bf16.mxu0 0
    %264 = vmatpush1.bf16.msra.mxu0 0
    %265 = vmatprep.subr.bf16.mxu0 0
    %266 = vmatpush1.bf16.msra.mxu0 0
    %267 = vmatprep.subr.bf16.mxu0 0
    %268 = vmatpush1.bf16.msra.mxu0 0
    %269 = vmatprep.subr.bf16.mxu0 0
    %270 = vmatpush1.bf16.msra.mxu0 0
    %271 = vmatprep.subr.bf16.mxu0 0
    %272 = vmatpush1.bf16.msra.mxu0 0
    %273 = vmatprep.subr.bf16.mxu0 0
    %274 = vmatpush1.bf16.msra.mxu0 0
    %275 = vmatprep.subr.bf16.mxu0 0
    %276 = vmatpush1.bf16.msra.mxu0 0
    %277 = vmatprep.mubr.bf16.mxu0 0
    %278 = vmatmul.mubr.bf16.gmra.mrb[0].mxu0 %v202
    %v279 = vpop.f32.mrb[0].mxu0
    %v280 = vadd.f32 %v158, %v279
    %v281 = vpop.f32.mrb[0].mxu0
    %v282 = vadd.f32 %v159, %v281
    %v283 = vpop.f32.mrb[0].mxu0
    %v284 = vpop.f32.mrb[0].mxu0
    %285 = vdwg.mxu0
    %vm286 = vcmask 1041408
    %v287 = vsel %vm286, %v239, 0.0
    %v288 = vrot.slane %v287, 4
    %v289 = vadd.f32 %v287, %v288
    %v290 = vrot.slane %v289, 2
    %v291 = vadd.f32 %v289, %v290
    %v292 = vrot.slane %v291, 1
    %v293 = vadd.f32 %v291, %v292
    %v294 = vsel %vm286, %v241, 0.0
    %v295 = vrot.slane %v294, 4
    %v296 = vadd.f32 %v294, %v295
    %v297 = vrot.slane %v296, 2
    %v298 = vadd.f32 %v296, %v297
    %v299 = vrot.slane %v298, 1
    %v300 = vadd.f32 %v298, %v299
    %v301 = vsel %vm286, %v280, 0.0
    %v302 = vrot.slane %v301, 4
    %v303 = vadd.f32 %v301, %v302
    %v304 = vrot.slane %v303, 2
    %v305 = vadd.f32 %v303, %v304
    %v306 = vrot.slane %v305, 1
    %v307 = vadd.f32 %v305, %v306
    %v308 = vsel %vm286, %v282, 0.0
    %v309 = vrot.slane %v308, 4
    %v310 = vadd.f32 %v308, %v309
    %v311 = vrot.slane %v310, 2
    %v312 = vadd.f32 %v310, %v311
    %v313 = vrot.slane %v312, 1
    %v314 = vadd.f32 %v312, %v313
    %v315 = vmul.f32 %v293, 0.5
    %v316 = vmul.f32 %v300, 0.5
    %v317 = vmul.f32 %v307, 0.5
    %v318 = vmul.f32 %v314, 0.5
    %v319 = vmul.f32 %v239, %v239
    %v320 = vmul.f32 %v241, %v241
    %v321 = vmul.f32 %v280, %v280
    %v322 = vmul.f32 %v282, %v282
    %v323 = vsel %vm286, %v319, 0.0
    %v324 = vrot.slane %v323, 4
    %v325 = vadd.f32 %v323, %v324
    %v326 = vrot.slane %v325, 2
    %v327 = vadd.f32 %v325, %v326
    %v328 = vrot.slane %v327, 1
    %v329 = vadd.f32 %v327, %v328
    %v330 = vsel %vm286, %v320, 0.0
    %v331 = vrot.slane %v330, 4
    %v332 = vadd.f32 %v330, %v331
    %v333 = vrot.slane %v332, 2
    %v334 = vadd.f32 %v332, %v333
    %v335 = vrot.slane %v334, 1
    %v336 = vadd.f32 %v334, %v335
    %v337 = vsel %vm286, %v321, 0.0
    %v338 = vrot.slane %v337, 4
    %v339 = vadd.f32 %v337, %v338
    %v340 = vrot.slane %v339, 2
    %v341 = vadd.f32 %v339, %v340
    %v342 = vrot.slane %v341, 1
    %v343 = vadd.f32 %v341, %v342
    %v344 = vsel %vm286, %v322, 0.0
    %v345 = vrot.slane %v344, 4
    %v346 = vadd.f32 %v344, %v345
    %v347 = vrot.slane %v346, 2
    %v348 = vadd.f32 %v346, %v347
    %v349 = vrot.slane %v348, 1
    %v350 = vadd.f32 %v348, %v349
    %v351 = vmul.f32 %v329, 0.5
    %v352 = vmul.f32 %v336, 0.5
    %v353 = vmul.f32 %v343, 0.5
    %v354 = vmul.f32 %v350, 0.5
    %v355 = vmul.f32 %v315, %v315
    %v356 = vmul.f32 %v316, %v316
    %v357 = vmul.f32 %v317, %v317
    %v358 = vmul.f32 %v318, %v318
    %v359 = vsub.f32 %v351, %v355
    %v360 = vsub.f32 %v352, %v356
    %v361 = vsub.f32 %v353, %v357
    %v362 = vsub.f32 %v354, %v358
    %v363 = vmax.f32 %v359, 0.0
    %v364 = vmax.f32 %v360, 0.0
    %v365 = vmax.f32 %v361, 0.0
    %v366 = vmax.f32 %v362, 0.0
    %v367 = vadd.f32 %v363, 1e-05
    %v368 = vadd.f32 %v364, 1e-05
    %v369 = vadd.f32 %v365, 1e-05
    %v370 = vadd.f32 %v366, 1e-05
    %v371 = vrsqrt.pop %v367
    %v372 = vrsqrt.pop %v368
    %v373 = vrsqrt.pop %v369
    %v374 = vrsqrt.pop %v370
    %v379 = vcombine.low %v371, %v372
    %v380 = vcombine.low %v373, %v374
    %v382 = vunpack.c.l.s4 1966171168
    %v383 = vunpack.c.0.s8 %v382
    %v384 = vlaneseq
    %v385 = vshrl.u32 %v384, 7
    %v386 = vsub.s32 %v383, %v385
    %v387 = vrot.slane %v379, %v386
    %v389 = vunpack.c.l.s4 1966171168
    %v390 = vunpack.c.0.s8 %v389
    %v391 = vlaneseq
    %v392 = vshrl.u32 %v391, 7
    %v393 = vsub.s32 %v390, %v392
    %v394 = vrot.slane %v380, %v393
    %v395 = vcombine.low %v387, %v394
    %v397 = vunpack.c.l.s4 1966171168
    %v398 = vunpack.c.0.s8 %v397
    %v399 = vlaneseq
    %v400 = vshrl.u32 %v399, 7
    %v401 = vsub.s32 %v398, %v400
    %v402 = vrot.slane %v395, %v401
    %v404 = vmul.f32 %v80, %v402
    %v406 = vlaneseq
    %v407 = vshrl.u32 %v406, 7
    %v408 = vsub.s32 0, %v407
    %v409 = vrot.slane %v404, %v408
    %v410 = vlaneseq
    %v411 = vshrl.u32 %v410, 7
    %v412 = vsub.s32 1, %v411
    %v413 = vrot.slane %v404, %v412
    %v414 = vlaneseq
    %v415 = vshrl.u32 %v414, 7
    %v416 = vsub.s32 2, %v415
    %v417 = vrot.slane %v404, %v416
    %v418 = vlaneseq
    %v419 = vshrl.u32 %v418, 7
    %v420 = vsub.s32 3, %v419
    %v421 = vrot.slane %v404, %v420
    %v426 = vmul.f32 %v315, %v409
    %v427 = vmul.f32 %v316, %v413
    %v428 = vmul.f32 %v317, %v417
    %v429 = vmul.f32 %v318, %v421
    %v434 = vcombine.low %v426, %v427
    %v435 = vcombine.low %v428, %v429
    %v437 = vunpack.c.l.s4 1966171168
    %v438 = vunpack.c.0.s8 %v437
    %v439 = vlaneseq
    %v440 = vshrl.u32 %v439, 7
    %v441 = vsub.s32 %v438, %v440
    %v442 = vrot.slane %v434, %v441
    %v444 = vunpack.c.l.s4 1966171168
    %v445 = vunpack.c.0.s8 %v444
    %v446 = vlaneseq
    %v447 = vshrl.u32 %v446, 7
    %v448 = vsub.s32 %v445, %v447
    %v449 = vrot.slane %v435, %v448
    %v450 = vcombine.low %v442, %v449
    %v452 = vunpack.c.l.s4 1966171168
    %v453 = vunpack.c.0.s8 %v452
    %v454 = vlaneseq
    %v455 = vshrl.u32 %v454, 7
    %v456 = vsub.s32 %v453, %v455
    %v457 = vrot.slane %v450, %v456
    %v459 = vsub.f32 %v82, %v457
    %v460 = vmul.f32 %v239, %v409
    %v461 = vmul.f32 %v241, %v413
    %v462 = vmul.f32 %v280, %v417
    %v463 = vmul.f32 %v282, %v421
    %v465 = vlaneseq
    %v466 = vshrl.u32 %v465, 7
    %v467 = vsub.s32 0, %v466
    %v468 = vrot.slane %v459, %v467
    %v469 = vlaneseq
    %v470 = vshrl.u32 %v469, 7
    %v471 = vsub.s32 1, %v470
    %v472 = vrot.slane %v459, %v471
    %v473 = vlaneseq
    %v474 = vshrl.u32 %v473, 7
    %v475 = vsub.s32 2, %v474
    %v476 = vrot.slane %v459, %v475
    %v477 = vlaneseq
    %v478 = vshrl.u32 %v477, 7
    %v479 = vsub.s32 3, %v478
    %v480 = vrot.slane %v459, %v479
    %v485 = vadd.f32 %v460, %v468
    %v486 = vadd.f32 %v461, %v472
    %v487 = vadd.f32 %v462, %v476
    %v488 = vadd.f32 %v463, %v480
    %vm489 = vcmp.gt.f32.partialorder %v485, 0.0
    %vm490 = vcmp.gt.f32.partialorder %v486, 0.0
    %vm491 = vcmp.gt.f32.partialorder %v487, 0.0
    %vm492 = vcmp.gt.f32.partialorder %v488, 0.0
    %v493 = vmul.f32 %v485, 0.01
    %v494 = vmul.f32 %v486, 0.01
    %v495 = vmul.f32 %v487, 0.01
    %v496 = vmul.f32 %v488, 0.01
    %v497 = vsel %vm489, %v485, %v493
    %v498 = vsel %vm490, %v486, %v494
    %v499 = vsel %vm491, %v487, %v495
    %v500 = vsel %vm492, %v488, %v496
    %v501 = vpack.c.bf16 %v497, %v497
    %v502 = vpack.c.bf16 %v498, %v498
    %v503 = vpack.c.bf16 %v499, %v499
    %v504 = vpack.c.bf16 %v500, %v500
    %v505 = vld [vmem:[#allocation4] sm:$0xff]
    %v506 = vld [vmem:[#allocation4 + $0x8] sm:$0xff]
    %v507 = vld [vmem:[#allocation4 + $0x10] sm:$0xff]
    %v508 = vld [vmem:[#allocation4 + $0x18] sm:$0xff]
    %v509 = vld [vmem:[#allocation4 + $0x20] sm:$0xff]
    %v510 = vld [vmem:[#allocation4 + $0x28] sm:$0xff]
    %v511 = vld [vmem:[#allocation4 + $0x30] sm:$0xff]
    %v512 = vld [vmem:[#allocation4 + $0x38] sm:$0xff]
    %v513 = vld [vmem:[#allocation4 + $0x40] sm:$0xff]
    %v514 = vld [vmem:[#allocation4 + $0x48] sm:$0xff]
    %v515 = vld [vmem:[#allocation4 + $0x50] sm:$0xff]
    %v516 = vld [vmem:[#allocation4 + $0x58] sm:$0xff]
    %v517 = vld [vmem:[#allocation4 + $0x60] sm:$0xff]
    %v518 = vld [vmem:[#allocation4 + $0x68] sm:$0xff]
    %v519 = vld [vmem:[#allocation4 + $0x70] sm:$0xff]
    %v520 = vld [vmem:[#allocation4 + $0x78] sm:$0xff]
    %v521 = vld [vmem:[#allocation4 + $0x80] sm:$0xff]
    %v522 = vld [vmem:[#allocation4 + $0x88] sm:$0xff]
    %v523 = vld [vmem:[#allocation4 + $0x90] sm:$0xff]
    %v524 = vld [vmem:[#allocation4 + $0x98] sm:$0xff]
    %v525 = vld [vmem:[#allocation4 + $0xa0] sm:$0xff]
    %v526 = vld [vmem:[#allocation4 + $0xa8] sm:$0xff]
    %v527 = vld [vmem:[#allocation4 + $0xb0] sm:$0xff]
    %v528 = vld [vmem:[#allocation4 + $0xb8] sm:$0xff]
    %v529 = vld [vmem:[#allocation4 + $0xc0] sm:$0xff]
    %v530 = vld [vmem:[#allocation4 + $0xc8] sm:$0xff]
    %v531 = vld [vmem:[#allocation4 + $0xd0] sm:$0xff]
    %v532 = vld [vmem:[#allocation4 + $0xd8] sm:$0xff]
    %v533 = vld [vmem:[#allocation4 + $0xe0] sm:$0xff]
    %v534 = vld [vmem:[#allocation4 + $0xe8] sm:$0xff]
    %v535 = vld [vmem:[#allocation4 + $0xf0] sm:$0xff]
    %v536 = vld [vmem:[#allocation4 + $0xf8] sm:$0xff]
    %v537 = vld [vmem:[#allocation4 + $0x100] sm:$0xff]
    %v538 = vld [vmem:[#allocation4 + $0x108] sm:$0xff]
    %v539 = vld [vmem:[#allocation4 + $0x110] sm:$0xff]
    %v540 = vld [vmem:[#allocation4 + $0x118] sm:$0xff]
    %v541 = vld [vmem:[#allocation4 + $0x120] sm:$0xff]
    %v542 = vld [vmem:[#allocation4 + $0x128] sm:$0xff]
    %v543 = vld [vmem:[#allocation4 + $0x130] sm:$0xff]
    %v544 = vld [vmem:[#allocation4 + $0x138] sm:$0xff]
    %v545 = vld [vmem:[#allocation4 + $0x140] sm:$0xff]
    %v546 = vld [vmem:[#allocation4 + $0x148] sm:$0xff]
    %v547 = vld [vmem:[#allocation4 + $0x150] sm:$0xff]
    %v548 = vld [vmem:[#allocation4 + $0x158] sm:$0xff]
    %v549 = vld [vmem:[#allocation4 + $0x160] sm:$0xff]
    %v550 = vld [vmem:[#allocation4 + $0x168] sm:$0xff]
    %v551 = vld [vmem:[#allocation4 + $0x170] sm:$0xff]
    %v552 = vld [vmem:[#allocation4 + $0x178] sm:$0xff]
    %v553 = vld [vmem:[#allocation4 + $0x180] sm:$0xff]
    %v554 = vld [vmem:[#allocation4 + $0x188] sm:$0xff]
    %v555 = vld [vmem:[#allocation4 + $0x190] sm:$0xff]
    %v556 = vld [vmem:[#allocation4 + $0x198] sm:$0xff]
    %v557 = vld [vmem:[#allocation4 + $0x1a0] sm:$0xff]
    %v558 = vld [vmem:[#allocation4 + $0x1a8] sm:$0xff]
    %v559 = vld [vmem:[#allocation4 + $0x1b0] sm:$0xff]
    %v560 = vld [vmem:[#allocation4 + $0x1b8] sm:$0xff]
    %v561 = vld [vmem:[#allocation4 + $0x1c0] sm:$0xff]
    %v562 = vld [vmem:[#allocation4 + $0x1c8] sm:$0xff]
    %v563 = vld [vmem:[#allocation4 + $0x1d0] sm:$0xff]
    %v564 = vld [vmem:[#allocation4 + $0x1d8] sm:$0xff]
    %v565 = vld [vmem:[#allocation4 + $0x1e0] sm:$0xff]
    %v566 = vld [vmem:[#allocation4 + $0x1e8] sm:$0xff]
    %v567 = vld [vmem:[#allocation4 + $0x1f0] sm:$0xff]
    %v568 = vld [vmem:[#allocation4 + $0x1f8] sm:$0xff]
    %v569 = vld [vmem:[#allocation4 + $0x200] sm:$0xff]
    %v570 = vld [vmem:[#allocation4 + $0x208] sm:$0xff]
    %v571 = vld [vmem:[#allocation4 + $0x210] sm:$0xff]
    %v572 = vld [vmem:[#allocation4 + $0x218] sm:$0xff]
    %v573 = vld [vmem:[#allocation4 + $0x220] sm:$0xff]
    %v574 = vld [vmem:[#allocation4 + $0x228] sm:$0xff]
    %v575 = vld [vmem:[#allocation4 + $0x230] sm:$0xff]
    %v576 = vld [vmem:[#allocation4 + $0x238] sm:$0xff]
    %v577 = vld [vmem:[#allocation4 + $0x240] sm:$0xff]
    %v578 = vld [vmem:[#allocation4 + $0x248] sm:$0xff]
    %v579 = vld [vmem:[#allocation4 + $0x250] sm:$0xff]
    %v580 = vld [vmem:[#allocation4 + $0x258] sm:$0xff]
    %v581 = vld [vmem:[#allocation4 + $0x260] sm:$0xff]
    %v582 = vld [vmem:[#allocation4 + $0x268] sm:$0xff]
    %v583 = vld [vmem:[#allocation4 + $0x270] sm:$0xff]
    %v584 = vld [vmem:[#allocation4 + $0x278] sm:$0xff]
    %v585 = vld [vmem:[#allocation4 + $0x280] sm:$0xff]
    %v586 = vld [vmem:[#allocation4 + $0x288] sm:$0xff]
    %v587 = vld [vmem:[#allocation4 + $0x290] sm:$0xff]
    %v588 = vld [vmem:[#allocation4 + $0x298] sm:$0xff]
    %v589 = vld [vmem:[#allocation4 + $0x2a0] sm:$0xff]
    %v590 = vld [vmem:[#allocation4 + $0x2a8] sm:$0xff]
    %v591 = vld [vmem:[#allocation4 + $0x2b0] sm:$0xff]
    %v592 = vld [vmem:[#allocation4 + $0x2b8] sm:$0xff]
    %v593 = vld [vmem:[#allocation4 + $0x2c0] sm:$0xff]
    %v594 = vld [vmem:[#allocation4 + $0x2c8] sm:$0xff]
    %v595 = vld [vmem:[#allocation4 + $0x2d0] sm:$0xff]
    %v596 = vld [vmem:[#allocation4 + $0x2d8] sm:$0xff]
    %v597 = vld [vmem:[#allocation4 + $0x2e0] sm:$0xff]
    %v598 = vld [vmem:[#allocation4 + $0x2e8] sm:$0xff]
    %v599 = vld [vmem:[#allocation4 + $0x2f0] sm:$0xff]
    %v600 = vld [vmem:[#allocation4 + $0x2f8] sm:$0xff]
    %v601 = vld [vmem:[#allocation4 + $0x300] sm:$0xff]
    %v602 = vld [vmem:[#allocation4 + $0x308] sm:$0xff]
    %v603 = vld [vmem:[#allocation4 + $0x310] sm:$0xff]
    %v604 = vld [vmem:[#allocation4 + $0x318] sm:$0xff]
    %v605 = vld [vmem:[#allocation4 + $0x320] sm:$0xff]
    %v606 = vld [vmem:[#allocation4 + $0x328] sm:$0xff]
    %v607 = vld [vmem:[#allocation4 + $0x330] sm:$0xff]
    %v608 = vld [vmem:[#allocation4 + $0x338] sm:$0xff]
    %v609 = vld [vmem:[#allocation4 + $0x340] sm:$0xff]
    %v610 = vld [vmem:[#allocation4 + $0x348] sm:$0xff]
    %v611 = vld [vmem:[#allocation4 + $0x350] sm:$0xff]
    %v612 = vld [vmem:[#allocation4 + $0x358] sm:$0xff]
    %v613 = vld [vmem:[#allocation4 + $0x360] sm:$0xff]
    %v614 = vld [vmem:[#allocation4 + $0x368] sm:$0xff]
    %v615 = vld [vmem:[#allocation4 + $0x370] sm:$0xff]
    %v616 = vld [vmem:[#allocation4 + $0x378] sm:$0xff]
    %v617 = vld [vmem:[#allocation4 + $0x380] sm:$0xff]
    %v618 = vld [vmem:[#allocation4 + $0x388] sm:$0xff]
    %v619 = vld [vmem:[#allocation4 + $0x390] sm:$0xff]
    %v620 = vld [vmem:[#allocation4 + $0x398] sm:$0xff]
    %v621 = vld [vmem:[#allocation4 + $0x3a0] sm:$0xff]
    %v622 = vld [vmem:[#allocation4 + $0x3a8] sm:$0xff]
    %v623 = vld [vmem:[#allocation4 + $0x3b0] sm:$0xff]
    %v624 = vld [vmem:[#allocation4 + $0x3b8] sm:$0xff]
    %v625 = vld [vmem:[#allocation4 + $0x3c0] sm:$0xff]
    %v626 = vld [vmem:[#allocation4 + $0x3c8] sm:$0xff]
    %v627 = vld [vmem:[#allocation4 + $0x3d0] sm:$0xff]
    %v628 = vld [vmem:[#allocation4 + $0x3d8] sm:$0xff]
    %v629 = vld [vmem:[#allocation4 + $0x3e0] sm:$0xff]
    %v630 = vld [vmem:[#allocation4 + $0x3e8] sm:$0xff]
    %v631 = vld [vmem:[#allocation4 + $0x3f0] sm:$0xff]
    %v632 = vld [vmem:[#allocation4 + $0x3f8] sm:$0xff]
    %v761 = vunpack.c.l.b16 %v505
    %v762 = vunpack.c.h.b16 %v505
    %v763 = vunpack.c.l.b16 %v506
    %v764 = vunpack.c.h.b16 %v506
    %v765 = vunpack.c.l.b16 %v507
    %v766 = vunpack.c.h.b16 %v507
    %v767 = vunpack.c.l.b16 %v508
    %v768 = vunpack.c.h.b16 %v508
    %v769 = vunpack.c.l.b16 %v509
    %v770 = vunpack.c.h.b16 %v509
    %v771 = vunpack.c.l.b16 %v510
    %v772 = vunpack.c.h.b16 %v510
    %v773 = vunpack.c.l.b16 %v511
    %v774 = vunpack.c.h.b16 %v511
    %v775 = vunpack.c.l.b16 %v512
    %v776 = vunpack.c.h.b16 %v512
    %v777 = vunpack.c.l.b16 %v513
    %v778 = vunpack.c.h.b16 %v513
    %v779 = vunpack.c.l.b16 %v514
    %v780 = vunpack.c.h.b16 %v514
    %v781 = vunpack.c.l.b16 %v515
    %v782 = vunpack.c.h.b16 %v515
    %v783 = vunpack.c.l.b16 %v516
    %v784 = vunpack.c.h.b16 %v516
    %v785 = vunpack.c.l.b16 %v517
    %v786 = vunpack.c.h.b16 %v517
    %v787 = vunpack.c.l.b16 %v518
    %v788 = vunpack.c.h.b16 %v518
    %v789 = vunpack.c.l.b16 %v519
    %v790 = vunpack.c.h.b16 %v519
    %v791 = vunpack.c.l.b16 %v520
    %v792 = vunpack.c.h.b16 %v520
    %v793 = vunpack.c.l.b16 %v521
    %v794 = vunpack.c.h.b16 %v521
    %v795 = vunpack.c.l.b16 %v522
    %v796 = vunpack.c.h.b16 %v522
    %v797 = vunpack.c.l.b16 %v523
    %v798 = vunpack.c.h.b16 %v523
    %v799 = vunpack.c.l.b16 %v524
    %v800 = vunpack.c.h.b16 %v524
    %v801 = vunpack.c.l.b16 %v525
    %v802 = vunpack.c.h.b16 %v525
    %v803 = vunpack.c.l.b16 %v526
    %v804 = vunpack.c.h.b16 %v526
    %v805 = vunpack.c.l.b16 %v527
    %v806 = vunpack.c.h.b16 %v527
    %v807 = vunpack.c.l.b16 %v528
    %v808 = vunpack.c.h.b16 %v528
    %v809 = vunpack.c.l.b16 %v529
    %v810 = vunpack.c.h.b16 %v529
    %v811 = vunpack.c.l.b16 %v530
    %v812 = vunpack.c.h.b16 %v530
    %v813 = vunpack.c.l.b16 %v531
    %v814 = vunpack.c.h.b16 %v531
    %v815 = vunpack.c.l.b16 %v532
    %v816 = vunpack.c.h.b16 %v532
    %v817 = vunpack.c.l.b16 %v533
    %v818 = vunpack.c.h.b16 %v533
    %v819 = vunpack.c.l.b16 %v534
    %v820 = vunpack.c.h.b16 %v534
    %v821 = vunpack.c.l.b16 %v535
    %v822 = vunpack.c.h.b16 %v535
    %v823 = vunpack.c.l.b16 %v536
    %v824 = vunpack.c.h.b16 %v536
    %v825 = vunpack.c.l.b16 %v537
    %v826 = vunpack.c.h.b16 %v537
    %v827 = vunpack.c.l.b16 %v538
    %v828 = vunpack.c.h.b16 %v538
    %v829 = vunpack.c.l.b16 %v539
    %v830 = vunpack.c.h.b16 %v539
    %v831 = vunpack.c.l.b16 %v540
    %v832 = vunpack.c.h.b16 %v540
    %v833 = vunpack.c.l.b16 %v541
    %v834 = vunpack.c.h.b16 %v541
    %v835 = vunpack.c.l.b16 %v542
    %v836 = vunpack.c.h.b16 %v542
    %v837 = vunpack.c.l.b16 %v543
    %v838 = vunpack.c.h.b16 %v543
    %v839 = vunpack.c.l.b16 %v544
    %v840 = vunpack.c.h.b16 %v544
    %v841 = vunpack.c.l.b16 %v545
    %v842 = vunpack.c.h.b16 %v545
    %v843 = vunpack.c.l.b16 %v546
    %v844 = vunpack.c.h.b16 %v546
    %v845 = vunpack.c.l.b16 %v547
    %v846 = vunpack.c.h.b16 %v547
    %v847 = vunpack.c.l.b16 %v548
    %v848 = vunpack.c.h.b16 %v548
    %v849 = vunpack.c.l.b16 %v549
    %v850 = vunpack.c.h.b16 %v549
    %v851 = vunpack.c.l.b16 %v550
    %v852 = vunpack.c.h.b16 %v550
    %v853 = vunpack.c.l.b16 %v551
    %v854 = vunpack.c.h.b16 %v551
    %v855 = vunpack.c.l.b16 %v552
    %v856 = vunpack.c.h.b16 %v552
    %v857 = vunpack.c.l.b16 %v553
    %v858 = vunpack.c.h.b16 %v553
    %v859 = vunpack.c.l.b16 %v554
    %v860 = vunpack.c.h.b16 %v554
    %v861 = vunpack.c.l.b16 %v555
    %v862 = vunpack.c.h.b16 %v555
    %v863 = vunpack.c.l.b16 %v556
    %v864 = vunpack.c.h.b16 %v556
    %v865 = vunpack.c.l.b16 %v557
    %v866 = vunpack.c.h.b16 %v557
    %v867 = vunpack.c.l.b16 %v558
    %v868 = vunpack.c.h.b16 %v558
    %v869 = vunpack.c.l.b16 %v559
    %v870 = vunpack.c.h.b16 %v559
    %v871 = vunpack.c.l.b16 %v560
    %v872 = vunpack.c.h.b16 %v560
    %v873 = vunpack.c.l.b16 %v561
    %v874 = vunpack.c.h.b16 %v561
    %v875 = vunpack.c.l.b16 %v562
    %v876 = vunpack.c.h.b16 %v562
    %v877 = vunpack.c.l.b16 %v563
    %v878 = vunpack.c.h.b16 %v563
    %v879 = vunpack.c.l.b16 %v564
    %v880 = vunpack.c.h.b16 %v564
    %v881 = vunpack.c.l.b16 %v565
    %v882 = vunpack.c.h.b16 %v565
    %v883 = vunpack.c.l.b16 %v566
    %v884 = vunpack.c.h.b16 %v566
    %v885 = vunpack.c.l.b16 %v567
    %v886 = vunpack.c.h.b16 %v567
    %v887 = vunpack.c.l.b16 %v568
    %v888 = vunpack.c.h.b16 %v568
    %v889 = vunpack.c.l.b16 %v569
    %v890 = vunpack.c.h.b16 %v569
    %v891 = vunpack.c.l.b16 %v570
    %v892 = vunpack.c.h.b16 %v570
    %v893 = vunpack.c.l.b16 %v571
    %v894 = vunpack.c.h.b16 %v571
    %v895 = vunpack.c.l.b16 %v572
    %v896 = vunpack.c.h.b16 %v572
    %v897 = vunpack.c.l.b16 %v573
    %v898 = vunpack.c.h.b16 %v573
    %v899 = vunpack.c.l.b16 %v574
    %v900 = vunpack.c.h.b16 %v574
    %v901 = vunpack.c.l.b16 %v575
    %v902 = vunpack.c.h.b16 %v575
    %v903 = vunpack.c.l.b16 %v576
    %v904 = vunpack.c.h.b16 %v576
    %v905 = vunpack.c.l.b16 %v577
    %v906 = vunpack.c.h.b16 %v577
    %v907 = vunpack.c.l.b16 %v578
    %v908 = vunpack.c.h.b16 %v578
    %v909 = vunpack.c.l.b16 %v579
    %v910 = vunpack.c.h.b16 %v579
    %v911 = vunpack.c.l.b16 %v580
    %v912 = vunpack.c.h.b16 %v580
    %v913 = vunpack.c.l.b16 %v581
    %v914 = vunpack.c.h.b16 %v581
    %v915 = vunpack.c.l.b16 %v582
    %v916 = vunpack.c.h.b16 %v582
    %v917 = vunpack.c.l.b16 %v583
    %v918 = vunpack.c.h.b16 %v583
    %v919 = vunpack.c.l.b16 %v584
    %v920 = vunpack.c.h.b16 %v584
    %v921 = vunpack.c.l.b16 %v585
    %v922 = vunpack.c.h.b16 %v585
    %v923 = vunpack.c.l.b16 %v586
    %v924 = vunpack.c.h.b16 %v586
    %v925 = vunpack.c.l.b16 %v587
    %v926 = vunpack.c.h.b16 %v587
    %v927 = vunpack.c.l.b16 %v588
    %v928 = vunpack.c.h.b16 %v588
    %v929 = vunpack.c.l.b16 %v589
    %v930 = vunpack.c.h.b16 %v589
    %v931 = vunpack.c.l.b16 %v590
    %v932 = vunpack.c.h.b16 %v590
    %v933 = vunpack.c.l.b16 %v591
    %v934 = vunpack.c.h.b16 %v591
    %v935 = vunpack.c.l.b16 %v592
    %v936 = vunpack.c.h.b16 %v592
    %v937 = vunpack.c.l.b16 %v593
    %v938 = vunpack.c.h.b16 %v593
    %v939 = vunpack.c.l.b16 %v594
    %v940 = vunpack.c.h.b16 %v594
    %v941 = vunpack.c.l.b16 %v595
    %v942 = vunpack.c.h.b16 %v595
    %v943 = vunpack.c.l.b16 %v596
    %v944 = vunpack.c.h.b16 %v596
    %v945 = vunpack.c.l.b16 %v597
    %v946 = vunpack.c.h.b16 %v597
    %v947 = vunpack.c.l.b16 %v598
    %v948 = vunpack.c.h.b16 %v598
    %v949 = vunpack.c.l.b16 %v599
    %v950 = vunpack.c.h.b16 %v599
    %v951 = vunpack.c.l.b16 %v600
    %v952 = vunpack.c.h.b16 %v600
    %v953 = vunpack.c.l.b16 %v601
    %v954 = vunpack.c.h.b16 %v601
    %v955 = vunpack.c.l.b16 %v602
    %v956 = vunpack.c.h.b16 %v602
    %v957 = vunpack.c.l.b16 %v603
    %v958 = vunpack.c.h.b16 %v603
    %v959 = vunpack.c.l.b16 %v604
    %v960 = vunpack.c.h.b16 %v604
    %v961 = vunpack.c.l.b16 %v605
    %v962 = vunpack.c.h.b16 %v605
    %v963 = vunpack.c.l.b16 %v606
    %v964 = vunpack.c.h.b16 %v606
    %v965 = vunpack.c.l.b16 %v607
    %v966 = vunpack.c.h.b16 %v607
    %v967 = vunpack.c.l.b16 %v608
    %v968 = vunpack.c.h.b16 %v608
    %v969 = vunpack.c.l.b16 %v609
    %v970 = vunpack.c.h.b16 %v609
    %v971 = vunpack.c.l.b16 %v610
    %v972 = vunpack.c.h.b16 %v610
    %v973 = vunpack.c.l.b16 %v611
    %v974 = vunpack.c.h.b16 %v611
    %v975 = vunpack.c.l.b16 %v612
    %v976 = vunpack.c.h.b16 %v612
    %v977 = vunpack.c.l.b16 %v613
    %v978 = vunpack.c.h.b16 %v613
    %v979 = vunpack.c.l.b16 %v614
    %v980 = vunpack.c.h.b16 %v614
    %v981 = vunpack.c.l.b16 %v615
    %v982 = vunpack.c.h.b16 %v615
    %v983 = vunpack.c.l.b16 %v616
    %v984 = vunpack.c.h.b16 %v616
    %v985 = vunpack.c.l.b16 %v617
    %v986 = vunpack.c.h.b16 %v617
    %v987 = vunpack.c.l.b16 %v618
    %v988 = vunpack.c.h.b16 %v618
    %v989 = vunpack.c.l.b16 %v619
    %v990 = vunpack.c.h.b16 %v619
    %v991 = vunpack.c.l.b16 %v620
    %v992 = vunpack.c.h.b16 %v620
    %v993 = vunpack.c.l.b16 %v621
    %v994 = vunpack.c.h.b16 %v621
    %v995 = vunpack.c.l.b16 %v622
    %v996 = vunpack.c.h.b16 %v622
    %v997 = vunpack.c.l.b16 %v623
    %v998 = vunpack.c.h.b16 %v623
    %v999 = vunpack.c.l.b16 %v624
    %v1000 = vunpack.c.h.b16 %v624
    %v1001 = vunpack.c.l.b16 %v625
    %v1002 = vunpack.c.h.b16 %v625
    %v1003 = vunpack.c.l.b16 %v626
    %v1004 = vunpack.c.h.b16 %v626
    %v1005 = vunpack.c.l.b16 %v627
    %v1006 = vunpack.c.h.b16 %v627
    %v1007 = vunpack.c.l.b16 %v628
    %v1008 = vunpack.c.h.b16 %v628
    %v1009 = vunpack.c.l.b16 %v629
    %v1010 = vunpack.c.h.b16 %v629
    %v1011 = vunpack.c.l.b16 %v630
    %v1012 = vunpack.c.h.b16 %v630
    %v1013 = vunpack.c.l.b16 %v631
    %v1014 = vunpack.c.h.b16 %v631
    %v1015 = vunpack.c.l.b16 %v632
    %v1016 = vunpack.c.h.b16 %v632
    %v1017 = vpack.c.b16 %v765, %v761
    %v1018 = vpack.c.b16 %v766, %v762
    %v1019 = vpack.c.b16 %v767, %v763
    %v1020 = vpack.c.b16 %v768, %v764
    %v1021 = vpack.c.b16 %v773, %v769
    %v1022 = vpack.c.b16 %v774, %v770
    %v1023 = vpack.c.b16 %v775, %v771
    %v1024 = vpack.c.b16 %v776, %v772
    %v1025 = vpack.c.b16 %v781, %v777
    %v1026 = vpack.c.b16 %v782, %v778
    %v1027 = vpack.c.b16 %v783, %v779
    %v1028 = vpack.c.b16 %v784, %v780
    %v1029 = vpack.c.b16 %v789, %v785
    %v1030 = vpack.c.b16 %v790, %v786
    %v1031 = vpack.c.b16 %v791, %v787
    %v1032 = vpack.c.b16 %v792, %v788
    %v1033 = vpack.c.b16 %v797, %v793
    %v1034 = vpack.c.b16 %v798, %v794
    %v1035 = vpack.c.b16 %v799, %v795
    %v1036 = vpack.c.b16 %v800, %v796
    %v1037 = vpack.c.b16 %v805, %v801
    %v1038 = vpack.c.b16 %v806, %v802
    %v1039 = vpack.c.b16 %v807, %v803
    %v1040 = vpack.c.b16 %v808, %v804
    %v1041 = vpack.c.b16 %v813, %v809
    %v1042 = vpack.c.b16 %v814, %v810
    %v1043 = vpack.c.b16 %v815, %v811
    %v1044 = vpack.c.b16 %v816, %v812
    %v1045 = vpack.c.b16 %v821, %v817
    %v1046 = vpack.c.b16 %v822, %v818
    %v1047 = vpack.c.b16 %v823, %v819
    %v1048 = vpack.c.b16 %v824, %v820
    %v1049 = vpack.c.b16 %v829, %v825
    %v1050 = vpack.c.b16 %v830, %v826
    %v1051 = vpack.c.b16 %v831, %v827
    %v1052 = vpack.c.b16 %v832, %v828
    %v1053 = vpack.c.b16 %v837, %v833
    %v1054 = vpack.c.b16 %v838, %v834
    %v1055 = vpack.c.b16 %v839, %v835
    %v1056 = vpack.c.b16 %v840, %v836
    %v1057 = vpack.c.b16 %v845, %v841
    %v1058 = vpack.c.b16 %v846, %v842
    %v1059 = vpack.c.b16 %v847, %v843
    %v1060 = vpack.c.b16 %v848, %v844
    %v1061 = vpack.c.b16 %v853, %v849
    %v1062 = vpack.c.b16 %v854, %v850
    %v1063 = vpack.c.b16 %v855, %v851
    %v1064 = vpack.c.b16 %v856, %v852
    %v1065 = vpack.c.b16 %v861, %v857
    %v1066 = vpack.c.b16 %v862, %v858
    %v1067 = vpack.c.b16 %v863, %v859
    %v1068 = vpack.c.b16 %v864, %v860
    %v1069 = vpack.c.b16 %v869, %v865
    %v1070 = vpack.c.b16 %v870, %v866
    %v1071 = vpack.c.b16 %v871, %v867
    %v1072 = vpack.c.b16 %v872, %v868
    %v1073 = vpack.c.b16 %v877, %v873
    %v1074 = vpack.c.b16 %v878, %v874
    %v1075 = vpack.c.b16 %v879, %v875
    %v1076 = vpack.c.b16 %v880, %v876
    %v1077 = vpack.c.b16 %v885, %v881
    %v1078 = vpack.c.b16 %v886, %v882
    %v1079 = vpack.c.b16 %v887, %v883
    %v1080 = vpack.c.b16 %v888, %v884
    %v1081 = vpack.c.b16 %v893, %v889
    %v1082 = vpack.c.b16 %v894, %v890
    %v1083 = vpack.c.b16 %v895, %v891
    %v1084 = vpack.c.b16 %v896, %v892
    %v1085 = vpack.c.b16 %v901, %v897
    %v1086 = vpack.c.b16 %v902, %v898
    %v1087 = vpack.c.b16 %v903, %v899
    %v1088 = vpack.c.b16 %v904, %v900
    %v1089 = vpack.c.b16 %v909, %v905
    %v1090 = vpack.c.b16 %v910, %v906
    %v1091 = vpack.c.b16 %v911, %v907
    %v1092 = vpack.c.b16 %v912, %v908
    %v1093 = vpack.c.b16 %v917, %v913
    %v1094 = vpack.c.b16 %v918, %v914
    %v1095 = vpack.c.b16 %v919, %v915
    %v1096 = vpack.c.b16 %v920, %v916
    %v1097 = vpack.c.b16 %v925, %v921
    %v1098 = vpack.c.b16 %v926, %v922
    %v1099 = vpack.c.b16 %v927, %v923
    %v1100 = vpack.c.b16 %v928, %v924
    %v1101 = vpack.c.b16 %v933, %v929
    %v1102 = vpack.c.b16 %v934, %v930
    %v1103 = vpack.c.b16 %v935, %v931
    %v1104 = vpack.c.b16 %v936, %v932
    %v1105 = vpack.c.b16 %v941, %v937
    %v1106 = vpack.c.b16 %v942, %v938
    %v1107 = vpack.c.b16 %v943, %v939
    %v1108 = vpack.c.b16 %v944, %v940
    %v1109 = vpack.c.b16 %v949, %v945
    %v1110 = vpack.c.b16 %v950, %v946
    %v1111 = vpack.c.b16 %v951, %v947
    %v1112 = vpack.c.b16 %v952, %v948
    %v1113 = vpack.c.b16 %v957, %v953
    %v1114 = vpack.c.b16 %v958, %v954
    %v1115 = vpack.c.b16 %v959, %v955
    %v1116 = vpack.c.b16 %v960, %v956
    %v1117 = vpack.c.b16 %v965, %v961
    %v1118 = vpack.c.b16 %v966, %v962
    %v1119 = vpack.c.b16 %v967, %v963
    %v1120 = vpack.c.b16 %v968, %v964
    %v1121 = vpack.c.b16 %v973, %v969
    %v1122 = vpack.c.b16 %v974, %v970
    %v1123 = vpack.c.b16 %v975, %v971
    %v1124 = vpack.c.b16 %v976, %v972
    %v1125 = vpack.c.b16 %v981, %v977
    %v1126 = vpack.c.b16 %v982, %v978
    %v1127 = vpack.c.b16 %v983, %v979
    %v1128 = vpack.c.b16 %v984, %v980
    %v1129 = vpack.c.b16 %v989, %v985
    %v1130 = vpack.c.b16 %v990, %v986
    %v1131 = vpack.c.b16 %v991, %v987
    %v1132 = vpack.c.b16 %v992, %v988
    %v1133 = vpack.c.b16 %v997, %v993
    %v1134 = vpack.c.b16 %v998, %v994
    %v1135 = vpack.c.b16 %v999, %v995
    %v1136 = vpack.c.b16 %v1000, %v996
    %v1137 = vpack.c.b16 %v1005, %v1001
    %v1138 = vpack.c.b16 %v1006, %v1002
    %v1139 = vpack.c.b16 %v1007, %v1003
    %v1140 = vpack.c.b16 %v1008, %v1004
    %v1141 = vpack.c.b16 %v1013, %v1009
    %v1142 = vpack.c.b16 %v1014, %v1010
    %v1143 = vpack.c.b16 %v1015, %v1011
    %v1144 = vpack.c.b16 %v1016, %v1012
    %1273 = vmatprep.subr.bf16.mxu0 %v1018
    %1274 = vmatpush1.bf16.msra.mxu0 %v1017
    %1275 = vmatprep.subr.bf16.mxu0 %v1022
    %1276 = vmatpush1.bf16.msra.mxu0 %v1021
    %1277 = vmatprep.subr.bf16.mxu0 %v1026
    %1278 = vmatpush1.bf16.msra.mxu0 %v1025
    %1279 = vmatprep.subr.bf16.mxu0 %v1030
    %1280 = vmatpush1.bf16.msra.mxu0 %v1029
    %1281 = vmatprep.subr.bf16.mxu0 %v1034
    %1282 = vmatpush1.bf16.msra.mxu0 %v1033
    %1283 = vmatprep.subr.bf16.mxu0 %v1038
    %1284 = vmatpush1.bf16.msra.mxu0 %v1037
    %1285 = vmatprep.subr.bf16.mxu0 %v1042
    %1286 = vmatpush1.bf16.msra.mxu0 %v1041
    %1287 = vmatprep.subr.bf16.mxu0 %v1046
    %1288 = vmatpush1.bf16.msra.mxu0 %v1045
    %1289 = vmatprep.subr.bf16.mxu0 %v1050
    %1290 = vmatpush1.bf16.msra.mxu0 %v1049
    %1291 = vmatprep.subr.bf16.mxu0 %v1054
    %1292 = vmatpush1.bf16.msra.mxu0 %v1053
    %1293 = vmatprep.subr.bf16.mxu0 %v1058
    %1294 = vmatpush1.bf16.msra.mxu0 %v1057
    %1295 = vmatprep.subr.bf16.mxu0 %v1062
    %1296 = vmatpush1.bf16.msra.mxu0 %v1061
    %1297 = vmatprep.subr.bf16.mxu0 %v1066
    %1298 = vmatpush1.bf16.msra.mxu0 %v1065
    %1299 = vmatprep.subr.bf16.mxu0 %v1070
    %1300 = vmatpush1.bf16.msra.mxu0 %v1069
    %1301 = vmatprep.subr.bf16.mxu0 %v1074
    %1302 = vmatpush1.bf16.msra.mxu0 %v1073
    %1303 = vmatprep.subr.bf16.mxu0 %v1078
    %1304 = vmatpush1.bf16.msra.mxu0 %v1077
    %1305 = vmatprep.mubr.bf16.mxu0 %v502
    %1306 = vmatmul.mubr.bf16.gmra.mrb[0].mxu0 %v501
    %v1307 = vpop.f32.mrb[0].mxu0
    %v1308 = vadd.f32 0.0, %v1307
    %v1309 = vpop.f32.mrb[0].mxu0
    %v1310 = vadd.f32 0.0, %v1309
    %v1311 = vpop.f32.mrb[0].mxu0
    %v1312 = vpop.f32.mrb[0].mxu0
    %1313 = vdwg.mxu0
    %1314 = vmatprep.subr.bf16.mxu0 %v1082
    %1315 = vmatpush1.bf16.msra.mxu0 %v1081
    %1316 = vmatprep.subr.bf16.mxu0 %v1086
    %1317 = vmatpush1.bf16.msra.mxu0 %v1085
    %1318 = vmatprep.subr.bf16.mxu0 %v1090
    %1319 = vmatpush1.bf16.msra.mxu0 %v1089
    %1320 = vmatprep.subr.bf16.mxu0 %v1094
    %1321 = vmatpush1.bf16.msra.mxu0 %v1093
    %1322 = vmatprep.subr.bf16.mxu0 %v1098
    %1323 = vmatpush1.bf16.msra.mxu0 %v1097
    %1324 = vmatprep.subr.bf16.mxu0 %v1102
    %1325 = vmatpush1.bf16.msra.mxu0 %v1101
    %1326 = vmatprep.subr.bf16.mxu0 %v1106
    %1327 = vmatpush1.bf16.msra.mxu0 %v1105
    %1328 = vmatprep.subr.bf16.mxu0 %v1110
    %1329 = vmatpush1.bf16.msra.mxu0 %v1109
    %1330 = vmatprep.subr.bf16.mxu0 %v1114
    %1331 = vmatpush1.bf16.msra.mxu0 %v1113
    %1332 = vmatprep.subr.bf16.mxu0 %v1118
    %1333 = vmatpush1.bf16.msra.mxu0 %v1117
    %1334 = vmatprep.subr.bf16.mxu0 %v1122
    %1335 = vmatpush1.bf16.msra.mxu0 %v1121
    %1336 = vmatprep.subr.bf16.mxu0 %v1126
    %1337 = vmatpush1.bf16.msra.mxu0 %v1125
    %1338 = vmatprep.subr.bf16.mxu0 %v1130
    %1339 = vmatpush1.bf16.msra.mxu0 %v1129
    %1340 = vmatprep.subr.bf16.mxu0 %v1134
    %1341 = vmatpush1.bf16.msra.mxu0 %v1133
    %1342 = vmatprep.subr.bf16.mxu0 %v1138
    %1343 = vmatpush1.bf16.msra.mxu0 %v1137
    %1344 = vmatprep.subr.bf16.mxu0 %v1142
    %1345 = vmatpush1.bf16.msra.mxu0 %v1141
    %1346 = vmatprep.mubr.bf16.mxu0 %v504
    %1347 = vmatmul.mubr.bf16.gmra.mrb[0].mxu0 %v503
    %v1348 = vpop.f32.mrb[0].mxu0
    %v1349 = vadd.f32 %v1308, %v1348
    %v1350 = vpop.f32.mrb[0].mxu0
    %v1351 = vadd.f32 %v1310, %v1350
    %v1352 = vpop.f32.mrb[0].mxu0
    %v1353 = vpop.f32.mrb[0].mxu0
    %1354 = vdwg.mxu0
    %1355 = vmatprep.subr.bf16.mxu0 %v1020
    %1356 = vmatpush1.bf16.msra.mxu0 %v1019
    %1357 = vmatprep.subr.bf16.mxu0 %v1024
    %1358 = vmatpush1.bf16.msra.mxu0 %v1023
    %1359 = vmatprep.subr.bf16.mxu0 %v1028
    %1360 = vmatpush1.bf16.msra.mxu0 %v1027
    %1361 = vmatprep.subr.bf16.mxu0 %v1032
    %1362 = vmatpush1.bf16.msra.mxu0 %v1031
    %1363 = vmatprep.subr.bf16.mxu0 %v1036
    %1364 = vmatpush1.bf16.msra.mxu0 %v1035
    %1365 = vmatprep.subr.bf16.mxu0 %v1040
    %1366 = vmatpush1.bf16.msra.mxu0 %v1039
    %1367 = vmatprep.subr.bf16.mxu0 %v1044
    %1368 = vmatpush1.bf16.msra.mxu0 %v1043
    %1369 = vmatprep.subr.bf16.mxu0 %v1048
    %1370 = vmatpush1.bf16.msra.mxu0 %v1047
    %1371 = vmatprep.subr.bf16.mxu0 %v1052
    %1372 = vmatpush1.bf16.msra.mxu0 %v1051
    %1373 = vmatprep.subr.bf16.mxu0 %v1056
    %1374 = vmatpush1.bf16.msra.mxu0 %v1055
    %1375 = vmatprep.subr.bf16.mxu0 %v1060
    %1376 = vmatpush1.bf16.msra.mxu0 %v1059
    %1377 = vmatprep.subr.bf16.mxu0 %v1064
    %1378 = vmatpush1.bf16.msra.mxu0 %v1063
    %1379 = vmatprep.subr.bf16.mxu0 %v1068
    %1380 = vmatpush1.bf16.msra.mxu0 %v1067
    %1381 = vmatprep.subr.bf16.mxu0 %v1072
    %1382 = vmatpush1.bf16.msra.mxu0 %v1071
    %1383 = vmatprep.subr.bf16.mxu0 %v1076
    %1384 = vmatpush1.bf16.msra.mxu0 %v1075
    %1385 = vmatprep.subr.bf16.mxu0 %v1080
    %1386 = vmatpush1.bf16.msra.mxu0 %v1079
    %1387 = vmatprep.mubr.bf16.mxu0 %v502
    %1388 = vmatmul.mubr.bf16.gmra.mrb[0].mxu0 %v501
    %v1389 = vpop.f32.mrb[0].mxu0
    %v1390 = vadd.f32 0.0, %v1389
    %v1391 = vpop.f32.mrb[0].mxu0
    %v1392 = vadd.f32 0.0, %v1391
    %v1393 = vpop.f32.mrb[0].mxu0
    %v1394 = vpop.f32.mrb[0].mxu0
    %1395 = vdwg.mxu0
    %1396 = vmatprep.subr.bf16.mxu0 %v1084
    %1397 = vmatpush1.bf16.msra.mxu0 %v1083
    %1398 = vmatprep.subr.bf16.mxu0 %v1088
    %1399 = vmatpush1.bf16.msra.mxu0 %v1087
    %1400 = vmatprep.subr.bf16.mxu0 %v1092
    %1401 = vmatpush1.bf16.msra.mxu0 %v1091
    %1402 = vmatprep.subr.bf16.mxu0 %v1096
    %1403 = vmatpush1.bf16.msra.mxu0 %v1095
    %1404 = vmatprep.subr.bf16.mxu0 %v1100
    %1405 = vmatpush1.bf16.msra.mxu0 %v1099
    %1406 = vmatprep.subr.bf16.mxu0 %v1104
    %1407 = vmatpush1.bf16.msra.mxu0 %v1103
    %1408 = vmatprep.subr.bf16.mxu0 %v1108
    %1409 = vmatpush1.bf16.msra.mxu0 %v1107
    %1410 = vmatprep.subr.bf16.mxu0 %v1112
    %1411 = vmatpush1.bf16.msra.mxu0 %v1111
    %1412 = vmatprep.subr.bf16.mxu0 %v1116
    %1413 = vmatpush1.bf16.msra.mxu0 %v1115
    %1414 = vmatprep.subr.bf16.mxu0 %v1120
    %1415 = vmatpush1.bf16.msra.mxu0 %v1119
    %1416 = vmatprep.subr.bf16.mxu0 %v1124
    %1417 = vmatpush1.bf16.msra.mxu0 %v1123
    %1418 = vmatprep.subr.bf16.mxu0 %v1128
    %1419 = vmatpush1.bf16.msra.mxu0 %v1127
    %1420 = vmatprep.subr.bf16.mxu0 %v1132
    %1421 = vmatpush1.bf16.msra.mxu0 %v1131
    %1422 = vmatprep.subr.bf16.mxu0 %v1136
    %1423 = vmatpush1.bf16.msra.mxu0 %v1135
    %1424 = vmatprep.subr.bf16.mxu0 %v1140
    %1425 = vmatpush1.bf16.msra.mxu0 %v1139
    %1426 = vmatprep.subr.bf16.mxu0 %v1144
    %1427 = vmatpush1.bf16.msra.mxu0 %v1143
    %1428 = vmatprep.mubr.bf16.mxu0 %v504
    %1429 = vmatmul.mubr.bf16.gmra.mrb[0].mxu0 %v503
    %v1430 = vpop.f32.mrb[0].mxu0
    %v1431 = vadd.f32 %v1390, %v1430
    %v1432 = vpop.f32.mrb[0].mxu0
    %v1433 = vadd.f32 %v1392, %v1432
    %v1434 = vpop.f32.mrb[0].mxu0
    %v1435 = vpop.f32.mrb[0].mxu0
    %1436 = vdwg.mxu0
    %v1437 = vsel %vm286, %v1349, 0.0
    %v1438 = vrot.slane %v1437, 4
    %v1439 = vadd.f32 %v1437, %v1438
    %v1440 = vrot.slane %v1439, 2
    %v1441 = vadd.f32 %v1439, %v1440
    %v1442 = vrot.slane %v1441, 1
    %v1443 = vadd.f32 %v1441, %v1442
    %v1444 = vsel %vm286, %v1351, 0.0
    %v1445 = vrot.slane %v1444, 4
    %v1446 = vadd.f32 %v1444, %v1445
    %v1447 = vrot.slane %v1446, 2
    %v1448 = vadd.f32 %v1446, %v1447
    %v1449 = vrot.slane %v1448, 1
    %v1450 = vadd.f32 %v1448, %v1449
    %v1451 = vsel %vm286, %v1431, 0.0
    %v1452 = vrot.slane %v1451, 4
    %v1453 = vadd.f32 %v1451, %v1452
    %v1454 = vrot.slane %v1453, 2
    %v1455 = vadd.f32 %v1453, %v1454
    %v1456 = vrot.slane %v1455, 1
    %v1457 = vadd.f32 %v1455, %v1456
    %v1458 = vsel %vm286, %v1433, 0.0
    %v1459 = vrot.slane %v1458, 4
    %v1460 = vadd.f32 %v1458, %v1459
    %v1461 = vrot.slane %v1460, 2
    %v1462 = vadd.f32 %v1460, %v1461
    %v1463 = vrot.slane %v1462, 1
    %v1464 = vadd.f32 %v1462, %v1463
    %v1465 = vmul.f32 %v1443, 0.5
    %v1466 = vmul.f32 %v1450, 0.5
    %v1467 = vmul.f32 %v1457, 0.5
    %v1468 = vmul.f32 %v1464, 0.5
    %v1469 = vmul.f32 %v1349, %v1349
    %v1470 = vmul.f32 %v1351, %v1351
    %v1471 = vmul.f32 %v1431, %v1431
    %v1472 = vmul.f32 %v1433, %v1433
    %v1473 = vsel %vm286, %v1469, 0.0
    %v1474 = vrot.slane %v1473, 4
    %v1475 = vadd.f32 %v1473, %v1474
    %v1476 = vrot.slane %v1475, 2
    %v1477 = vadd.f32 %v1475, %v1476
    %v1478 = vrot.slane %v1477, 1
    %v1479 = vadd.f32 %v1477, %v1478
    %v1480 = vsel %vm286, %v1470, 0.0
    %v1481 = vrot.slane %v1480, 4
    %v1482 = vadd.f32 %v1480, %v1481
    %v1483 = vrot.slane %v1482, 2
    %v1484 = vadd.f32 %v1482, %v1483
    %v1485 = vrot.slane %v1484, 1
    %v1486 = vadd.f32 %v1484, %v1485
    %v1487 = vsel %vm286, %v1471, 0.0
    %v1488 = vrot.slane %v1487, 4
    %v1489 = vadd.f32 %v1487, %v1488
    %v1490 = vrot.slane %v1489, 2
    %v1491 = vadd.f32 %v1489, %v1490
    %v1492 = vrot.slane %v1491, 1
    %v1493 = vadd.f32 %v1491, %v1492
    %v1494 = vsel %vm286, %v1472, 0.0
    %v1495 = vrot.slane %v1494, 4
    %v1496 = vadd.f32 %v1494, %v1495
    %v1497 = vrot.slane %v1496, 2
    %v1498 = vadd.f32 %v1496, %v1497
    %v1499 = vrot.slane %v1498, 1
    %v1500 = vadd.f32 %v1498, %v1499
    %v1501 = vmul.f32 %v1479, 0.5
    %v1502 = vmul.f32 %v1486, 0.5
    %v1503 = vmul.f32 %v1493, 0.5
    %v1504 = vmul.f32 %v1500, 0.5
    %v1505 = vmul.f32 %v1465, %v1465
    %v1506 = vmul.f32 %v1466, %v1466
    %v1507 = vmul.f32 %v1467, %v1467
    %v1508 = vmul.f32 %v1468, %v1468
    %v1509 = vsub.f32 %v1501, %v1505
    %v1510 = vsub.f32 %v1502, %v1506
    %v1511 = vsub.f32 %v1503, %v1507
    %v1512 = vsub.f32 %v1504, %v1508
    %v1513 = vmax.f32 %v1509, 0.0
    %v1514 = vmax.f32 %v1510, 0.0
    %v1515 = vmax.f32 %v1511, 0.0
    %v1516 = vmax.f32 %v1512, 0.0
    %v1517 = vadd.f32 %v1513, 1e-05
    %v1518 = vadd.f32 %v1514, 1e-05
    %v1519 = vadd.f32 %v1515, 1e-05
    %v1520 = vadd.f32 %v1516, 1e-05
    %v1521 = vrsqrt.pop %v1517
    %v1522 = vrsqrt.pop %v1518
    %v1523 = vrsqrt.pop %v1519
    %v1524 = vrsqrt.pop %v1520
    %v1529 = vcombine.low %v1521, %v1522
    %v1530 = vcombine.low %v1523, %v1524
    %v1532 = vunpack.c.l.s4 1966171168
    %v1533 = vunpack.c.0.s8 %v1532
    %v1534 = vlaneseq
    %v1535 = vshrl.u32 %v1534, 7
    %v1536 = vsub.s32 %v1533, %v1535
    %v1537 = vrot.slane %v1529, %v1536
    %v1539 = vunpack.c.l.s4 1966171168
    %v1540 = vunpack.c.0.s8 %v1539
    %v1541 = vlaneseq
    %v1542 = vshrl.u32 %v1541, 7
    %v1543 = vsub.s32 %v1540, %v1542
    %v1544 = vrot.slane %v1530, %v1543
    %v1545 = vcombine.low %v1537, %v1544
    %v1547 = vunpack.c.l.s4 1966171168
    %v1548 = vunpack.c.0.s8 %v1547
    %v1549 = vlaneseq
    %v1550 = vshrl.u32 %v1549, 7
    %v1551 = vsub.s32 %v1548, %v1550
    %v1552 = vrot.slane %v1545, %v1551
    %v1554 = vmul.f32 %v84, %v1552
    %v1556 = vlaneseq
    %v1557 = vshrl.u32 %v1556, 7
    %v1558 = vsub.s32 0, %v1557
    %v1559 = vrot.slane %v1554, %v1558
    %v1560 = vlaneseq
    %v1561 = vshrl.u32 %v1560, 7
    %v1562 = vsub.s32 1, %v1561
    %v1563 = vrot.slane %v1554, %v1562
    %v1564 = vlaneseq
    %v1565 = vshrl.u32 %v1564, 7
    %v1566 = vsub.s32 2, %v1565
    %v1567 = vrot.slane %v1554, %v1566
    %v1568 = vlaneseq
    %v1569 = vshrl.u32 %v1568, 7
    %v1570 = vsub.s32 3, %v1569
    %v1571 = vrot.slane %v1554, %v1570
    %v1576 = vmul.f32 %v1465, %v1559
    %v1577 = vmul.f32 %v1466, %v1563
    %v1578 = vmul.f32 %v1467, %v1567
    %v1579 = vmul.f32 %v1468, %v1571
    %v1584 = vcombine.low %v1576, %v1577
    %v1585 = vcombine.low %v1578, %v1579
    %v1587 = vunpack.c.l.s4 1966171168
    %v1588 = vunpack.c.0.s8 %v1587
    %v1589 = vlaneseq
    %v1590 = vshrl.u32 %v1589, 7
    %v1591 = vsub.s32 %v1588, %v1590
    %v1592 = vrot.slane %v1584, %v1591
    %v1594 = vunpack.c.l.s4 1966171168
    %v1595 = vunpack.c.0.s8 %v1594
    %v1596 = vlaneseq
    %v1597 = vshrl.u32 %v1596, 7
    %v1598 = vsub.s32 %v1595, %v1597
    %v1599 = vrot.slane %v1585, %v1598
    %v1600 = vcombine.low %v1592, %v1599
    %v1602 = vunpack.c.l.s4 1966171168
    %v1603 = vunpack.c.0.s8 %v1602
    %v1604 = vlaneseq
    %v1605 = vshrl.u32 %v1604, 7
    %v1606 = vsub.s32 %v1603, %v1605
    %v1607 = vrot.slane %v1600, %v1606
    %v1609 = vsub.f32 %v86, %v1607
    %v1610 = vmul.f32 %v1349, %v1559
    %v1611 = vmul.f32 %v1351, %v1563
    %v1612 = vmul.f32 %v1431, %v1567
    %v1613 = vmul.f32 %v1433, %v1571
    %v1615 = vlaneseq
    %v1616 = vshrl.u32 %v1615, 7
    %v1617 = vsub.s32 0, %v1616
    %v1618 = vrot.slane %v1609, %v1617
    %v1619 = vlaneseq
    %v1620 = vshrl.u32 %v1619, 7
    %v1621 = vsub.s32 1, %v1620
    %v1622 = vrot.slane %v1609, %v1621
    %v1623 = vlaneseq
    %v1624 = vshrl.u32 %v1623, 7
    %v1625 = vsub.s32 2, %v1624
    %v1626 = vrot.slane %v1609, %v1625
    %v1627 = vlaneseq
    %v1628 = vshrl.u32 %v1627, 7
    %v1629 = vsub.s32 3, %v1628
    %v1630 = vrot.slane %v1609, %v1629
    %v1635 = vadd.f32 %v1610, %v1618
    %v1636 = vadd.f32 %v1611, %v1622
    %v1637 = vadd.f32 %v1612, %v1626
    %v1638 = vadd.f32 %v1613, %v1630
    %vm1639 = vcmp.gt.f32.partialorder %v1635, 0.0
    %vm1640 = vcmp.gt.f32.partialorder %v1636, 0.0
    %vm1641 = vcmp.gt.f32.partialorder %v1637, 0.0
    %vm1642 = vcmp.gt.f32.partialorder %v1638, 0.0
    %v1643 = vmul.f32 %v1635, 0.01
    %v1644 = vmul.f32 %v1636, 0.01
    %v1645 = vmul.f32 %v1637, 0.01
    %v1646 = vmul.f32 %v1638, 0.01
    %v1647 = vsel %vm1639, %v1635, %v1643
    %v1648 = vsel %vm1640, %v1636, %v1644
    %v1649 = vsel %vm1641, %v1637, %v1645
    %v1650 = vsel %vm1642, %v1638, %v1646
    %v1651 = vpack.c.bf16 %v1647, %v1647
    %v1652 = vpack.c.bf16 %v1648, %v1648
    %v1653 = vpack.c.bf16 %v1649, %v1649
    %v1654 = vpack.c.bf16 %v1650, %v1650
    %v1655 = vld [vmem:[#allocation6] sm:$0xff]
    %v1656 = vld [vmem:[#allocation6 + $0x8] sm:$0xff]
    %v1657 = vld [vmem:[#allocation6 + $0x10] sm:$0xff]
    %v1658 = vld [vmem:[#allocation6 + $0x18] sm:$0xff]
    %v1659 = vld [vmem:[#allocation6 + $0x20] sm:$0xff]
    %v1660 = vld [vmem:[#allocation6 + $0x28] sm:$0xff]
    %v1661 = vld [vmem:[#allocation6 + $0x30] sm:$0xff]
    %v1662 = vld [vmem:[#allocation6 + $0x38] sm:$0xff]
    %v1663 = vld [vmem:[#allocation6 + $0x40] sm:$0xff]
    %v1664 = vld [vmem:[#allocation6 + $0x48] sm:$0xff]
    %v1665 = vld [vmem:[#allocation6 + $0x50] sm:$0xff]
    %v1666 = vld [vmem:[#allocation6 + $0x58] sm:$0xff]
    %v1667 = vld [vmem:[#allocation6 + $0x60] sm:$0xff]
    %v1668 = vld [vmem:[#allocation6 + $0x68] sm:$0xff]
    %v1669 = vld [vmem:[#allocation6 + $0x70] sm:$0xff]
    %v1670 = vld [vmem:[#allocation6 + $0x78] sm:$0xff]
    %v1671 = vld [vmem:[#allocation6 + $0x80] sm:$0xff]
    %v1672 = vld [vmem:[#allocation6 + $0x88] sm:$0xff]
    %v1673 = vld [vmem:[#allocation6 + $0x90] sm:$0xff]
    %v1674 = vld [vmem:[#allocation6 + $0x98] sm:$0xff]
    %v1675 = vld [vmem:[#allocation6 + $0xa0] sm:$0xff]
    %v1676 = vld [vmem:[#allocation6 + $0xa8] sm:$0xff]
    %v1677 = vld [vmem:[#allocation6 + $0xb0] sm:$0xff]
    %v1678 = vld [vmem:[#allocation6 + $0xb8] sm:$0xff]
    %v1679 = vld [vmem:[#allocation6 + $0xc0] sm:$0xff]
    %v1680 = vld [vmem:[#allocation6 + $0xc8] sm:$0xff]
    %v1681 = vld [vmem:[#allocation6 + $0xd0] sm:$0xff]
    %v1682 = vld [vmem:[#allocation6 + $0xd8] sm:$0xff]
    %v1683 = vld [vmem:[#allocation6 + $0xe0] sm:$0xff]
    %v1684 = vld [vmem:[#allocation6 + $0xe8] sm:$0xff]
    %v1685 = vld [vmem:[#allocation6 + $0xf0] sm:$0xff]
    %v1686 = vld [vmem:[#allocation6 + $0xf8] sm:$0xff]
    %v1687 = vld [vmem:[#allocation6 + $0x100] sm:$0xff]
    %v1688 = vld [vmem:[#allocation6 + $0x108] sm:$0xff]
    %v1689 = vld [vmem:[#allocation6 + $0x110] sm:$0xff]
    %v1690 = vld [vmem:[#allocation6 + $0x118] sm:$0xff]
    %v1691 = vld [vmem:[#allocation6 + $0x120] sm:$0xff]
    %v1692 = vld [vmem:[#allocation6 + $0x128] sm:$0xff]
    %v1693 = vld [vmem:[#allocation6 + $0x130] sm:$0xff]
    %v1694 = vld [vmem:[#allocation6 + $0x138] sm:$0xff]
    %v1695 = vld [vmem:[#allocation6 + $0x140] sm:$0xff]
    %v1696 = vld [vmem:[#allocation6 + $0x148] sm:$0xff]
    %v1697 = vld [vmem:[#allocation6 + $0x150] sm:$0xff]
    %v1698 = vld [vmem:[#allocation6 + $0x158] sm:$0xff]
    %v1699 = vld [vmem:[#allocation6 + $0x160] sm:$0xff]
    %v1700 = vld [vmem:[#allocation6 + $0x168] sm:$0xff]
    %v1701 = vld [vmem:[#allocation6 + $0x170] sm:$0xff]
    %v1702 = vld [vmem:[#allocation6 + $0x178] sm:$0xff]
    %v1703 = vld [vmem:[#allocation6 + $0x180] sm:$0xff]
    %v1704 = vld [vmem:[#allocation6 + $0x188] sm:$0xff]
    %v1705 = vld [vmem:[#allocation6 + $0x190] sm:$0xff]
    %v1706 = vld [vmem:[#allocation6 + $0x198] sm:$0xff]
    %v1707 = vld [vmem:[#allocation6 + $0x1a0] sm:$0xff]
    %v1708 = vld [vmem:[#allocation6 + $0x1a8] sm:$0xff]
    %v1709 = vld [vmem:[#allocation6 + $0x1b0] sm:$0xff]
    %v1710 = vld [vmem:[#allocation6 + $0x1b8] sm:$0xff]
    %v1711 = vld [vmem:[#allocation6 + $0x1c0] sm:$0xff]
    %v1712 = vld [vmem:[#allocation6 + $0x1c8] sm:$0xff]
    %v1713 = vld [vmem:[#allocation6 + $0x1d0] sm:$0xff]
    %v1714 = vld [vmem:[#allocation6 + $0x1d8] sm:$0xff]
    %v1715 = vld [vmem:[#allocation6 + $0x1e0] sm:$0xff]
    %v1716 = vld [vmem:[#allocation6 + $0x1e8] sm:$0xff]
    %v1717 = vld [vmem:[#allocation6 + $0x1f0] sm:$0xff]
    %v1718 = vld [vmem:[#allocation6 + $0x1f8] sm:$0xff]
    %v1719 = vld [vmem:[#allocation6 + $0x200] sm:$0xff]
    %v1720 = vld [vmem:[#allocation6 + $0x208] sm:$0xff]
    %v1721 = vld [vmem:[#allocation6 + $0x210] sm:$0xff]
    %v1722 = vld [vmem:[#allocation6 + $0x218] sm:$0xff]
    %v1723 = vld [vmem:[#allocation6 + $0x220] sm:$0xff]
    %v1724 = vld [vmem:[#allocation6 + $0x228] sm:$0xff]
    %v1725 = vld [vmem:[#allocation6 + $0x230] sm:$0xff]
    %v1726 = vld [vmem:[#allocation6 + $0x238] sm:$0xff]
    %v1727 = vld [vmem:[#allocation6 + $0x240] sm:$0xff]
    %v1728 = vld [vmem:[#allocation6 + $0x248] sm:$0xff]
    %v1729 = vld [vmem:[#allocation6 + $0x250] sm:$0xff]
    %v1730 = vld [vmem:[#allocation6 + $0x258] sm:$0xff]
    %v1731 = vld [vmem:[#allocation6 + $0x260] sm:$0xff]
    %v1732 = vld [vmem:[#allocation6 + $0x268] sm:$0xff]
    %v1733 = vld [vmem:[#allocation6 + $0x270] sm:$0xff]
    %v1734 = vld [vmem:[#allocation6 + $0x278] sm:$0xff]
    %v1735 = vld [vmem:[#allocation6 + $0x280] sm:$0xff]
    %v1736 = vld [vmem:[#allocation6 + $0x288] sm:$0xff]
    %v1737 = vld [vmem:[#allocation6 + $0x290] sm:$0xff]
    %v1738 = vld [vmem:[#allocation6 + $0x298] sm:$0xff]
    %v1739 = vld [vmem:[#allocation6 + $0x2a0] sm:$0xff]
    %v1740 = vld [vmem:[#allocation6 + $0x2a8] sm:$0xff]
    %v1741 = vld [vmem:[#allocation6 + $0x2b0] sm:$0xff]
    %v1742 = vld [vmem:[#allocation6 + $0x2b8] sm:$0xff]
    %v1743 = vld [vmem:[#allocation6 + $0x2c0] sm:$0xff]
    %v1744 = vld [vmem:[#allocation6 + $0x2c8] sm:$0xff]
    %v1745 = vld [vmem:[#allocation6 + $0x2d0] sm:$0xff]
    %v1746 = vld [vmem:[#allocation6 + $0x2d8] sm:$0xff]
    %v1747 = vld [vmem:[#allocation6 + $0x2e0] sm:$0xff]
    %v1748 = vld [vmem:[#allocation6 + $0x2e8] sm:$0xff]
    %v1749 = vld [vmem:[#allocation6 + $0x2f0] sm:$0xff]
    %v1750 = vld [vmem:[#allocation6 + $0x2f8] sm:$0xff]
    %v1751 = vld [vmem:[#allocation6 + $0x300] sm:$0xff]
    %v1752 = vld [vmem:[#allocation6 + $0x308] sm:$0xff]
    %v1753 = vld [vmem:[#allocation6 + $0x310] sm:$0xff]
    %v1754 = vld [vmem:[#allocation6 + $0x318] sm:$0xff]
    %v1755 = vld [vmem:[#allocation6 + $0x320] sm:$0xff]
    %v1756 = vld [vmem:[#allocation6 + $0x328] sm:$0xff]
    %v1757 = vld [vmem:[#allocation6 + $0x330] sm:$0xff]
    %v1758 = vld [vmem:[#allocation6 + $0x338] sm:$0xff]
    %v1759 = vld [vmem:[#allocation6 + $0x340] sm:$0xff]
    %v1760 = vld [vmem:[#allocation6 + $0x348] sm:$0xff]
    %v1761 = vld [vmem:[#allocation6 + $0x350] sm:$0xff]
    %v1762 = vld [vmem:[#allocation6 + $0x358] sm:$0xff]
    %v1763 = vld [vmem:[#allocation6 + $0x360] sm:$0xff]
    %v1764 = vld [vmem:[#allocation6 + $0x368] sm:$0xff]
    %v1765 = vld [vmem:[#allocation6 + $0x370] sm:$0xff]
    %v1766 = vld [vmem:[#allocation6 + $0x378] sm:$0xff]
    %v1767 = vld [vmem:[#allocation6 + $0x380] sm:$0xff]
    %v1768 = vld [vmem:[#allocation6 + $0x388] sm:$0xff]
    %v1769 = vld [vmem:[#allocation6 + $0x390] sm:$0xff]
    %v1770 = vld [vmem:[#allocation6 + $0x398] sm:$0xff]
    %v1771 = vld [vmem:[#allocation6 + $0x3a0] sm:$0xff]
    %v1772 = vld [vmem:[#allocation6 + $0x3a8] sm:$0xff]
    %v1773 = vld [vmem:[#allocation6 + $0x3b0] sm:$0xff]
    %v1774 = vld [vmem:[#allocation6 + $0x3b8] sm:$0xff]
    %v1775 = vld [vmem:[#allocation6 + $0x3c0] sm:$0xff]
    %v1776 = vld [vmem:[#allocation6 + $0x3c8] sm:$0xff]
    %v1777 = vld [vmem:[#allocation6 + $0x3d0] sm:$0xff]
    %v1778 = vld [vmem:[#allocation6 + $0x3d8] sm:$0xff]
    %v1779 = vld [vmem:[#allocation6 + $0x3e0] sm:$0xff]
    %v1780 = vld [vmem:[#allocation6 + $0x3e8] sm:$0xff]
    %v1781 = vld [vmem:[#allocation6 + $0x3f0] sm:$0xff]
    %v1782 = vld [vmem:[#allocation6 + $0x3f8] sm:$0xff]
    %v1911 = vunpack.c.l.b16 %v1655
    %v1912 = vunpack.c.h.b16 %v1655
    %v1913 = vunpack.c.l.b16 %v1656
    %v1914 = vunpack.c.h.b16 %v1656
    %v1915 = vunpack.c.l.b16 %v1657
    %v1916 = vunpack.c.h.b16 %v1657
    %v1917 = vunpack.c.l.b16 %v1658
    %v1918 = vunpack.c.h.b16 %v1658
    %v1919 = vunpack.c.l.b16 %v1659
    %v1920 = vunpack.c.h.b16 %v1659
    %v1921 = vunpack.c.l.b16 %v1660
    %v1922 = vunpack.c.h.b16 %v1660
    %v1923 = vunpack.c.l.b16 %v1661
    %v1924 = vunpack.c.h.b16 %v1661
    %v1925 = vunpack.c.l.b16 %v1662
    %v1926 = vunpack.c.h.b16 %v1662
    %v1927 = vunpack.c.l.b16 %v1663
    %v1928 = vunpack.c.h.b16 %v1663
    %v1929 = vunpack.c.l.b16 %v1664
    %v1930 = vunpack.c.h.b16 %v1664
    %v1931 = vunpack.c.l.b16 %v1665
    %v1932 = vunpack.c.h.b16 %v1665
    %v1933 = vunpack.c.l.b16 %v1666
    %v1934 = vunpack.c.h.b16 %v1666
    %v1935 = vunpack.c.l.b16 %v1667
    %v1936 = vunpack.c.h.b16 %v1667
    %v1937 = vunpack.c.l.b16 %v1668
    %v1938 = vunpack.c.h.b16 %v1668
    %v1939 = vunpack.c.l.b16 %v1669
    %v1940 = vunpack.c.h.b16 %v1669
    %v1941 = vunpack.c.l.b16 %v1670
    %v1942 = vunpack.c.h.b16 %v1670
    %v1943 = vunpack.c.l.b16 %v1671
    %v1944 = vunpack.c.h.b16 %v1671
    %v1945 = vunpack.c.l.b16 %v1672
    %v1946 = vunpack.c.h.b16 %v1672
    %v1947 = vunpack.c.l.b16 %v1673
    %v1948 = vunpack.c.h.b16 %v1673
    %v1949 = vunpack.c.l.b16 %v1674
    %v1950 = vunpack.c.h.b16 %v1674
    %v1951 = vunpack.c.l.b16 %v1675
    %v1952 = vunpack.c.h.b16 %v1675
    %v1953 = vunpack.c.l.b16 %v1676
    %v1954 = vunpack.c.h.b16 %v1676
    %v1955 = vunpack.c.l.b16 %v1677
    %v1956 = vunpack.c.h.b16 %v1677
    %v1957 = vunpack.c.l.b16 %v1678
    %v1958 = vunpack.c.h.b16 %v1678
    %v1959 = vunpack.c.l.b16 %v1679
    %v1960 = vunpack.c.h.b16 %v1679
    %v1961 = vunpack.c.l.b16 %v1680
    %v1962 = vunpack.c.h.b16 %v1680
    %v1963 = vunpack.c.l.b16 %v1681
    %v1964 = vunpack.c.h.b16 %v1681
    %v1965 = vunpack.c.l.b16 %v1682
    %v1966 = vunpack.c.h.b16 %v1682
    %v1967 = vunpack.c.l.b16 %v1683
    %v1968 = vunpack.c.h.b16 %v1683
    %v1969 = vunpack.c.l.b16 %v1684
    %v1970 = vunpack.c.h.b16 %v1684
    %v1971 = vunpack.c.l.b16 %v1685
    %v1972 = vunpack.c.h.b16 %v1685
    %v1973 = vunpack.c.l.b16 %v1686
    %v1974 = vunpack.c.h.b16 %v1686
    %v1975 = vunpack.c.l.b16 %v1687
    %v1976 = vunpack.c.h.b16 %v1687
    %v1977 = vunpack.c.l.b16 %v1688
    %v1978 = vunpack.c.h.b16 %v1688
    %v1979 = vunpack.c.l.b16 %v1689
    %v1980 = vunpack.c.h.b16 %v1689
    %v1981 = vunpack.c.l.b16 %v1690
    %v1982 = vunpack.c.h.b16 %v1690
    %v1983 = vunpack.c.l.b16 %v1691
    %v1984 = vunpack.c.h.b16 %v1691
    %v1985 = vunpack.c.l.b16 %v1692
    %v1986 = vunpack.c.h.b16 %v1692
    %v1987 = vunpack.c.l.b16 %v1693
    %v1988 = vunpack.c.h.b16 %v1693
    %v1989 = vunpack.c.l.b16 %v1694
    %v1990 = vunpack.c.h.b16 %v1694
    %v1991 = vunpack.c.l.b16 %v1695
    %v1992 = vunpack.c.h.b16 %v1695
    %v1993 = vunpack.c.l.b16 %v1696
    %v1994 = vunpack.c.h.b16 %v1696
    %v1995 = vunpack.c.l.b16 %v1697
    %v1996 = vunpack.c.h.b16 %v1697
    %v1997 = vunpack.c.l.b16 %v1698
    %v1998 = vunpack.c.h.b16 %v1698
    %v1999 = vunpack.c.l.b16 %v1699
    %v2000 = vunpack.c.h.b16 %v1699
    %v2001 = vunpack.c.l.b16 %v1700
    %v2002 = vunpack.c.h.b16 %v1700
    %v2003 = vunpack.c.l.b16 %v1701
    %v2004 = vunpack.c.h.b16 %v1701
    %v2005 = vunpack.c.l.b16 %v1702
    %v2006 = vunpack.c.h.b16 %v1702
    %v2007 = vunpack.c.l.b16 %v1703
    %v2008 = vunpack.c.h.b16 %v1703
    %v2009 = vunpack.c.l.b16 %v1704
    %v2010 = vunpack.c.h.b16 %v1704
    %v2011 = vunpack.c.l.b16 %v1705
    %v2012 = vunpack.c.h.b16 %v1705
    %v2013 = vunpack.c.l.b16 %v1706
    %v2014 = vunpack.c.h.b16 %v1706
    %v2015 = vunpack.c.l.b16 %v1707
    %v2016 = vunpack.c.h.b16 %v1707
    %v2017 = vunpack.c.l.b16 %v1708
    %v2018 = vunpack.c.h.b16 %v1708
    %v2019 = vunpack.c.l.b16 %v1709
    %v2020 = vunpack.c.h.b16 %v1709
    %v2021 = vunpack.c.l.b16 %v1710
    %v2022 = vunpack.c.h.b16 %v1710
    %v2023 = vunpack.c.l.b16 %v1711
    %v2024 = vunpack.c.h.b16 %v1711
    %v2025 = vunpack.c.l.b16 %v1712
    %v2026 = vunpack.c.h.b16 %v1712
    %v2027 = vunpack.c.l.b16 %v1713
    %v2028 = vunpack.c.h.b16 %v1713
    %v2029 = vunpack.c.l.b16 %v1714
    %v2030 = vunpack.c.h.b16 %v1714
    %v2031 = vunpack.c.l.b16 %v1715
    %v2032 = vunpack.c.h.b16 %v1715
    %v2033 = vunpack.c.l.b16 %v1716
    %v2034 = vunpack.c.h.b16 %v1716
    %v2035 = vunpack.c.l.b16 %v1717
    %v2036 = vunpack.c.h.b16 %v1717
    %v2037 = vunpack.c.l.b16 %v1718
    %v2038 = vunpack.c.h.b16 %v1718
    %v2039 = vunpack.c.l.b16 %v1719
    %v2040 = vunpack.c.h.b16 %v1719
    %v2041 = vunpack.c.l.b16 %v1720
    %v2042 = vunpack.c.h.b16 %v1720
    %v2043 = vunpack.c.l.b16 %v1721
    %v2044 = vunpack.c.h.b16 %v1721
    %v2045 = vunpack.c.l.b16 %v1722
    %v2046 = vunpack.c.h.b16 %v1722
    %v2047 = vunpack.c.l.b16 %v1723
    %v2048 = vunpack.c.h.b16 %v1723
    %v2049 = vunpack.c.l.b16 %v1724
    %v2050 = vunpack.c.h.b16 %v1724
    %v2051 = vunpack.c.l.b16 %v1725
    %v2052 = vunpack.c.h.b16 %v1725
    %v2053 = vunpack.c.l.b16 %v1726
    %v2054 = vunpack.c.h.b16 %v1726
    %v2055 = vunpack.c.l.b16 %v1727
    %v2056 = vunpack.c.h.b16 %v1727
    %v2057 = vunpack.c.l.b16 %v1728
    %v2058 = vunpack.c.h.b16 %v1728
    %v2059 = vunpack.c.l.b16 %v1729
    %v2060 = vunpack.c.h.b16 %v1729
    %v2061 = vunpack.c.l.b16 %v1730
    %v2062 = vunpack.c.h.b16 %v1730
    %v2063 = vunpack.c.l.b16 %v1731
    %v2064 = vunpack.c.h.b16 %v1731
    %v2065 = vunpack.c.l.b16 %v1732
    %v2066 = vunpack.c.h.b16 %v1732
    %v2067 = vunpack.c.l.b16 %v1733
    %v2068 = vunpack.c.h.b16 %v1733
    %v2069 = vunpack.c.l.b16 %v1734
    %v2070 = vunpack.c.h.b16 %v1734
    %v2071 = vunpack.c.l.b16 %v1735
    %v2072 = vunpack.c.h.b16 %v1735
    %v2073 = vunpack.c.l.b16 %v1736
    %v2074 = vunpack.c.h.b16 %v1736
    %v2075 = vunpack.c.l.b16 %v1737
    %v2076 = vunpack.c.h.b16 %v1737
    %v2077 = vunpack.c.l.b16 %v1738
    %v2078 = vunpack.c.h.b16 %v1738
    %v2079 = vunpack.c.l.b16 %v1739
    %v2080 = vunpack.c.h.b16 %v1739
    %v2081 = vunpack.c.l.b16 %v1740
    %v2082 = vunpack.c.h.b16 %v1740
    %v2083 = vunpack.c.l.b16 %v1741
    %v2084 = vunpack.c.h.b16 %v1741
    %v2085 = vunpack.c.l.b16 %v1742
    %v2086 = vunpack.c.h.b16 %v1742
    %v2087 = vunpack.c.l.b16 %v1743
    %v2088 = vunpack.c.h.b16 %v1743
    %v2089 = vunpack.c.l.b16 %v1744
    %v2090 = vunpack.c.h.b16 %v1744
    %v2091 = vunpack.c.l.b16 %v1745
    %v2092 = vunpack.c.h.b16 %v1745
    %v2093 = vunpack.c.l.b16 %v1746
    %v2094 = vunpack.c.h.b16 %v1746
    %v2095 = vunpack.c.l.b16 %v1747
    %v2096 = vunpack.c.h.b16 %v1747
    %v2097 = vunpack.c.l.b16 %v1748
    %v2098 = vunpack.c.h.b16 %v1748
    %v2099 = vunpack.c.l.b16 %v1749
    %v2100 = vunpack.c.h.b16 %v1749
    %v2101 = vunpack.c.l.b16 %v1750
    %v2102 = vunpack.c.h.b16 %v1750
    %v2103 = vunpack.c.l.b16 %v1751
    %v2104 = vunpack.c.h.b16 %v1751
    %v2105 = vunpack.c.l.b16 %v1752
    %v2106 = vunpack.c.h.b16 %v1752
    %v2107 = vunpack.c.l.b16 %v1753
    %v2108 = vunpack.c.h.b16 %v1753
    %v2109 = vunpack.c.l.b16 %v1754
    %v2110 = vunpack.c.h.b16 %v1754
    %v2111 = vunpack.c.l.b16 %v1755
    %v2112 = vunpack.c.h.b16 %v1755
    %v2113 = vunpack.c.l.b16 %v1756
    %v2114 = vunpack.c.h.b16 %v1756
    %v2115 = vunpack.c.l.b16 %v1757
    %v2116 = vunpack.c.h.b16 %v1757
    %v2117 = vunpack.c.l.b16 %v1758
    %v2118 = vunpack.c.h.b16 %v1758
    %v2119 = vunpack.c.l.b16 %v1759
    %v2120 = vunpack.c.h.b16 %v1759
    %v2121 = vunpack.c.l.b16 %v1760
    %v2122 = vunpack.c.h.b16 %v1760
    %v2123 = vunpack.c.l.b16 %v1761
    %v2124 = vunpack.c.h.b16 %v1761
    %v2125 = vunpack.c.l.b16 %v1762
    %v2126 = vunpack.c.h.b16 %v1762
    %v2127 = vunpack.c.l.b16 %v1763
    %v2128 = vunpack.c.h.b16 %v1763
    %v2129 = vunpack.c.l.b16 %v1764
    %v2130 = vunpack.c.h.b16 %v1764
    %v2131 = vunpack.c.l.b16 %v1765
    %v2132 = vunpack.c.h.b16 %v1765
    %v2133 = vunpack.c.l.b16 %v1766
    %v2134 = vunpack.c.h.b16 %v1766
    %v2135 = vunpack.c.l.b16 %v1767
    %v2136 = vunpack.c.h.b16 %v1767
    %v2137 = vunpack.c.l.b16 %v1768
    %v2138 = vunpack.c.h.b16 %v1768
    %v2139 = vunpack.c.l.b16 %v1769
    %v2140 = vunpack.c.h.b16 %v1769
    %v2141 = vunpack.c.l.b16 %v1770
    %v2142 = vunpack.c.h.b16 %v1770
    %v2143 = vunpack.c.l.b16 %v1771
    %v2144 = vunpack.c.h.b16 %v1771
    %v2145 = vunpack.c.l.b16 %v1772
    %v2146 = vunpack.c.h.b16 %v1772
    %v2147 = vunpack.c.l.b16 %v1773
    %v2148 = vunpack.c.h.b16 %v1773
    %v2149 = vunpack.c.l.b16 %v1774
    %v2150 = vunpack.c.h.b16 %v1774
    %v2151 = vunpack.c.l.b16 %v1775
    %v2152 = vunpack.c.h.b16 %v1775
    %v2153 = vunpack.c.l.b16 %v1776
    %v2154 = vunpack.c.h.b16 %v1776
    %v2155 = vunpack.c.l.b16 %v1777
    %v2156 = vunpack.c.h.b16 %v1777
    %v2157 = vunpack.c.l.b16 %v1778
    %v2158 = vunpack.c.h.b16 %v1778
    %v2159 = vunpack.c.l.b16 %v1779
    %v2160 = vunpack.c.h.b16 %v1779
    %v2161 = vunpack.c.l.b16 %v1780
    %v2162 = vunpack.c.h.b16 %v1780
    %v2163 = vunpack.c.l.b16 %v1781
    %v2164 = vunpack.c.h.b16 %v1781
    %v2165 = vunpack.c.l.b16 %v1782
    %v2166 = vunpack.c.h.b16 %v1782
    %v2167 = vpack.c.b16 %v1915, %v1911
    %v2168 = vpack.c.b16 %v1916, %v1912
    %v2169 = vpack.c.b16 %v1917, %v1913
    %v2170 = vpack.c.b16 %v1918, %v1914
    %v2171 = vpack.c.b16 %v1923, %v1919
    %v2172 = vpack.c.b16 %v1924, %v1920
    %v2173 = vpack.c.b16 %v1925, %v1921
    %v2174 = vpack.c.b16 %v1926, %v1922
    %v2175 = vpack.c.b16 %v1931, %v1927
    %v2176 = vpack.c.b16 %v1932, %v1928
    %v2177 = vpack.c.b16 %v1933, %v1929
    %v2178 = vpack.c.b16 %v1934, %v1930
    %v2179 = vpack.c.b16 %v1939, %v1935
    %v2180 = vpack.c.b16 %v1940, %v1936
    %v2181 = vpack.c.b16 %v1941, %v1937
    %v2182 = vpack.c.b16 %v1942, %v1938
    %v2183 = vpack.c.b16 %v1947, %v1943
    %v2184 = vpack.c.b16 %v1948, %v1944
    %v2185 = vpack.c.b16 %v1949, %v1945
    %v2186 = vpack.c.b16 %v1950, %v1946
    %v2187 = vpack.c.b16 %v1955, %v1951
    %v2188 = vpack.c.b16 %v1956, %v1952
    %v2189 = vpack.c.b16 %v1957, %v1953
    %v2190 = vpack.c.b16 %v1958, %v1954
    %v2191 = vpack.c.b16 %v1963, %v1959
    %v2192 = vpack.c.b16 %v1964, %v1960
    %v2193 = vpack.c.b16 %v1965, %v1961
    %v2194 = vpack.c.b16 %v1966, %v1962
    %v2195 = vpack.c.b16 %v1971, %v1967
    %v2196 = vpack.c.b16 %v1972, %v1968
    %v2197 = vpack.c.b16 %v1973, %v1969
    %v2198 = vpack.c.b16 %v1974, %v1970
    %v2199 = vpack.c.b16 %v1979, %v1975
    %v2200 = vpack.c.b16 %v1980, %v1976
    %v2201 = vpack.c.b16 %v1981, %v1977
    %v2202 = vpack.c.b16 %v1982, %v1978
    %v2203 = vpack.c.b16 %v1987, %v1983
    %v2204 = vpack.c.b16 %v1988, %v1984
    %v2205 = vpack.c.b16 %v1989, %v1985
    %v2206 = vpack.c.b16 %v1990, %v1986
    %v2207 = vpack.c.b16 %v1995, %v1991
    %v2208 = vpack.c.b16 %v1996, %v1992
    %v2209 = vpack.c.b16 %v1997, %v1993
    %v2210 = vpack.c.b16 %v1998, %v1994
    %v2211 = vpack.c.b16 %v2003, %v1999
    %v2212 = vpack.c.b16 %v2004, %v2000
    %v2213 = vpack.c.b16 %v2005, %v2001
    %v2214 = vpack.c.b16 %v2006, %v2002
    %v2215 = vpack.c.b16 %v2011, %v2007
    %v2216 = vpack.c.b16 %v2012, %v2008
    %v2217 = vpack.c.b16 %v2013, %v2009
    %v2218 = vpack.c.b16 %v2014, %v2010
    %v2219 = vpack.c.b16 %v2019, %v2015
    %v2220 = vpack.c.b16 %v2020, %v2016
    %v2221 = vpack.c.b16 %v2021, %v2017
    %v2222 = vpack.c.b16 %v2022, %v2018
    %v2223 = vpack.c.b16 %v2027, %v2023
    %v2224 = vpack.c.b16 %v2028, %v2024
    %v2225 = vpack.c.b16 %v2029, %v2025
    %v2226 = vpack.c.b16 %v2030, %v2026
    %v2227 = vpack.c.b16 %v2035, %v2031
    %v2228 = vpack.c.b16 %v2036, %v2032
    %v2229 = vpack.c.b16 %v2037, %v2033
    %v2230 = vpack.c.b16 %v2038, %v2034
    %v2231 = vpack.c.b16 %v2043, %v2039
    %v2232 = vpack.c.b16 %v2044, %v2040
    %v2233 = vpack.c.b16 %v2045, %v2041
    %v2234 = vpack.c.b16 %v2046, %v2042
    %v2235 = vpack.c.b16 %v2051, %v2047
    %v2236 = vpack.c.b16 %v2052, %v2048
    %v2237 = vpack.c.b16 %v2053, %v2049
    %v2238 = vpack.c.b16 %v2054, %v2050
    %v2239 = vpack.c.b16 %v2059, %v2055
    %v2240 = vpack.c.b16 %v2060, %v2056
    %v2241 = vpack.c.b16 %v2061, %v2057
    %v2242 = vpack.c.b16 %v2062, %v2058
    %v2243 = vpack.c.b16 %v2067, %v2063
    %v2244 = vpack.c.b16 %v2068, %v2064
    %v2245 = vpack.c.b16 %v2069, %v2065
    %v2246 = vpack.c.b16 %v2070, %v2066
    %v2247 = vpack.c.b16 %v2075, %v2071
    %v2248 = vpack.c.b16 %v2076, %v2072
    %v2249 = vpack.c.b16 %v2077, %v2073
    %v2250 = vpack.c.b16 %v2078, %v2074
    %v2251 = vpack.c.b16 %v2083, %v2079
    %v2252 = vpack.c.b16 %v2084, %v2080
    %v2253 = vpack.c.b16 %v2085, %v2081
    %v2254 = vpack.c.b16 %v2086, %v2082
    %v2255 = vpack.c.b16 %v2091, %v2087
    %v2256 = vpack.c.b16 %v2092, %v2088
    %v2257 = vpack.c.b16 %v2093, %v2089
    %v2258 = vpack.c.b16 %v2094, %v2090
    %v2259 = vpack.c.b16 %v2099, %v2095
    %v2260 = vpack.c.b16 %v2100, %v2096
    %v2261 = vpack.c.b16 %v2101, %v2097
    %v2262 = vpack.c.b16 %v2102, %v2098
    %v2263 = vpack.c.b16 %v2107, %v2103
    %v2264 = vpack.c.b16 %v2108, %v2104
    %v2265 = vpack.c.b16 %v2109, %v2105
    %v2266 = vpack.c.b16 %v2110, %v2106
    %v2267 = vpack.c.b16 %v2115, %v2111
    %v2268 = vpack.c.b16 %v2116, %v2112
    %v2269 = vpack.c.b16 %v2117, %v2113
    %v2270 = vpack.c.b16 %v2118, %v2114
    %v2271 = vpack.c.b16 %v2123, %v2119
    %v2272 = vpack.c.b16 %v2124, %v2120
    %v2273 = vpack.c.b16 %v2125, %v2121
    %v2274 = vpack.c.b16 %v2126, %v2122
    %v2275 = vpack.c.b16 %v2131, %v2127
    %v2276 = vpack.c.b16 %v2132, %v2128
    %v2277 = vpack.c.b16 %v2133, %v2129
    %v2278 = vpack.c.b16 %v2134, %v2130
    %v2279 = vpack.c.b16 %v2139, %v2135
    %v2280 = vpack.c.b16 %v2140, %v2136
    %v2281 = vpack.c.b16 %v2141, %v2137
    %v2282 = vpack.c.b16 %v2142, %v2138
    %v2283 = vpack.c.b16 %v2147, %v2143
    %v2284 = vpack.c.b16 %v2148, %v2144
    %v2285 = vpack.c.b16 %v2149, %v2145
    %v2286 = vpack.c.b16 %v2150, %v2146
    %v2287 = vpack.c.b16 %v2155, %v2151
    %v2288 = vpack.c.b16 %v2156, %v2152
    %v2289 = vpack.c.b16 %v2157, %v2153
    %v2290 = vpack.c.b16 %v2158, %v2154
    %v2291 = vpack.c.b16 %v2163, %v2159
    %v2292 = vpack.c.b16 %v2164, %v2160
    %v2293 = vpack.c.b16 %v2165, %v2161
    %v2294 = vpack.c.b16 %v2166, %v2162
    %2423 = vmatprep.subr.bf16.mxu0 %v2168
    %2424 = vmatpush1.bf16.msra.mxu0 %v2167
    %2425 = vmatprep.subr.bf16.mxu0 %v2172
    %2426 = vmatpush1.bf16.msra.mxu0 %v2171
    %2427 = vmatprep.subr.bf16.mxu0 %v2176
    %2428 = vmatpush1.bf16.msra.mxu0 %v2175
    %2429 = vmatprep.subr.bf16.mxu0 %v2180
    %2430 = vmatpush1.bf16.msra.mxu0 %v2179
    %2431 = vmatprep.subr.bf16.mxu0 %v2184
    %2432 = vmatpush1.bf16.msra.mxu0 %v2183
    %2433 = vmatprep.subr.bf16.mxu0 %v2188
    %2434 = vmatpush1.bf16.msra.mxu0 %v2187
    %2435 = vmatprep.subr.bf16.mxu0 %v2192
    %2436 = vmatpush1.bf16.msra.mxu0 %v2191
    %2437 = vmatprep.subr.bf16.mxu0 %v2196
    %2438 = vmatpush1.bf16.msra.mxu0 %v2195
    %2439 = vmatprep.subr.bf16.mxu0 %v2200
    %2440 = vmatpush1.bf16.msra.mxu0 %v2199
    %2441 = vmatprep.subr.bf16.mxu0 %v2204
    %2442 = vmatpush1.bf16.msra.mxu0 %v2203
    %2443 = vmatprep.subr.bf16.mxu0 %v2208
    %2444 = vmatpush1.bf16.msra.mxu0 %v2207
    %2445 = vmatprep.subr.bf16.mxu0 %v2212
    %2446 = vmatpush1.bf16.msra.mxu0 %v2211
    %2447 = vmatprep.subr.bf16.mxu0 %v2216
    %2448 = vmatpush1.bf16.msra.mxu0 %v2215
    %2449 = vmatprep.subr.bf16.mxu0 %v2220
    %2450 = vmatpush1.bf16.msra.mxu0 %v2219
    %2451 = vmatprep.subr.bf16.mxu0 %v2224
    %2452 = vmatpush1.bf16.msra.mxu0 %v2223
    %2453 = vmatprep.subr.bf16.mxu0 %v2228
    %2454 = vmatpush1.bf16.msra.mxu0 %v2227
    %2455 = vmatprep.mubr.bf16.mxu0 %v1652
    %2456 = vmatmul.mubr.bf16.gmra.mrb[0].mxu0 %v1651
    %v2457 = vpop.f32.mrb[0].mxu0
    %v2458 = vadd.f32 0.0, %v2457
    %v2459 = vpop.f32.mrb[0].mxu0
    %v2460 = vadd.f32 0.0, %v2459
    %v2461 = vpop.f32.mrb[0].mxu0
    %v2462 = vpop.f32.mrb[0].mxu0
    %2463 = vdwg.mxu0
    %2464 = vmatprep.subr.bf16.mxu0 %v2232
    %2465 = vmatpush1.bf16.msra.mxu0 %v2231
    %2466 = vmatprep.subr.bf16.mxu0 %v2236
    %2467 = vmatpush1.bf16.msra.mxu0 %v2235
    %2468 = vmatprep.subr.bf16.mxu0 %v2240
    %2469 = vmatpush1.bf16.msra.mxu0 %v2239
    %2470 = vmatprep.subr.bf16.mxu0 %v2244
    %2471 = vmatpush1.bf16.msra.mxu0 %v2243
    %2472 = vmatprep.subr.bf16.mxu0 %v2248
    %2473 = vmatpush1.bf16.msra.mxu0 %v2247
    %2474 = vmatprep.subr.bf16.mxu0 %v2252
    %2475 = vmatpush1.bf16.msra.mxu0 %v2251
    %2476 = vmatprep.subr.bf16.mxu0 %v2256
    %2477 = vmatpush1.bf16.msra.mxu0 %v2255
    %2478 = vmatprep.subr.bf16.mxu0 %v2260
    %2479 = vmatpush1.bf16.msra.mxu0 %v2259
    %2480 = vmatprep.subr.bf16.mxu0 %v2264
    %2481 = vmatpush1.bf16.msra.mxu0 %v2263
    %2482 = vmatprep.subr.bf16.mxu0 %v2268
    %2483 = vmatpush1.bf16.msra.mxu0 %v2267
    %2484 = vmatprep.subr.bf16.mxu0 %v2272
    %2485 = vmatpush1.bf16.msra.mxu0 %v2271
    %2486 = vmatprep.subr.bf16.mxu0 %v2276
    %2487 = vmatpush1.bf16.msra.mxu0 %v2275
    %2488 = vmatprep.subr.bf16.mxu0 %v2280
    %2489 = vmatpush1.bf16.msra.mxu0 %v2279
    %2490 = vmatprep.subr.bf16.mxu0 %v2284
    %2491 = vmatpush1.bf16.msra.mxu0 %v2283
    %2492 = vmatprep.subr.bf16.mxu0 %v2288
    %2493 = vmatpush1.bf16.msra.mxu0 %v2287
    %2494 = vmatprep.subr.bf16.mxu0 %v2292
    %2495 = vmatpush1.bf16.msra.mxu0 %v2291
    %2496 = vmatprep.mubr.bf16.mxu0 %v1654
    %2497 = vmatmul.mubr.bf16.gmra.mrb[0].mxu0 %v1653
    %v2498 = vpop.f32.mrb[0].mxu0
    %v2499 = vadd.f32 %v2458, %v2498
    %v2500 = vpop.f32.mrb[0].mxu0
    %v2501 = vadd.f32 %v2460, %v2500
    %v2502 = vpop.f32.mrb[0].mxu0
    %v2503 = vpop.f32.mrb[0].mxu0
    %2504 = vdwg.mxu0
    %2505 = vmatprep.subr.bf16.mxu0 %v2170
    %2506 = vmatpush1.bf16.msra.mxu0 %v2169
    %2507 = vmatprep.subr.bf16.mxu0 %v2174
    %2508 = vmatpush1.bf16.msra.mxu0 %v2173
    %2509 = vmatprep.subr.bf16.mxu0 %v2178
    %2510 = vmatpush1.bf16.msra.mxu0 %v2177
    %2511 = vmatprep.subr.bf16.mxu0 %v2182
    %2512 = vmatpush1.bf16.msra.mxu0 %v2181
    %2513 = vmatprep.subr.bf16.mxu0 %v2186
    %2514 = vmatpush1.bf16.msra.mxu0 %v2185
    %2515 = vmatprep.subr.bf16.mxu0 %v2190
    %2516 = vmatpush1.bf16.msra.mxu0 %v2189
    %2517 = vmatprep.subr.bf16.mxu0 %v2194
    %2518 = vmatpush1.bf16.msra.mxu0 %v2193
    %2519 = vmatprep.subr.bf16.mxu0 %v2198
    %2520 = vmatpush1.bf16.msra.mxu0 %v2197
    %2521 = vmatprep.subr.bf16.mxu0 %v2202
    %2522 = vmatpush1.bf16.msra.mxu0 %v2201
    %2523 = vmatprep.subr.bf16.mxu0 %v2206
    %2524 = vmatpush1.bf16.msra.mxu0 %v2205
    %2525 = vmatprep.subr.bf16.mxu0 %v2210
    %2526 = vmatpush1.bf16.msra.mxu0 %v2209
    %2527 = vmatprep.subr.bf16.mxu0 %v2214
    %2528 = vmatpush1.bf16.msra.mxu0 %v2213
    %2529 = vmatprep.subr.bf16.mxu0 %v2218
    %2530 = vmatpush1.bf16.msra.mxu0 %v2217
    %2531 = vmatprep.subr.bf16.mxu0 %v2222
    %2532 = vmatpush1.bf16.msra.mxu0 %v2221
    %2533 = vmatprep.subr.bf16.mxu0 %v2226
    %2534 = vmatpush1.bf16.msra.mxu0 %v2225
    %2535 = vmatprep.subr.bf16.mxu0 %v2230
    %2536 = vmatpush1.bf16.msra.mxu0 %v2229
    %2537 = vmatprep.mubr.bf16.mxu0 %v1652
    %2538 = vmatmul.mubr.bf16.gmra.mrb[0].mxu0 %v1651
    %v2539 = vpop.f32.mrb[0].mxu0
    %v2540 = vadd.f32 0.0, %v2539
    %v2541 = vpop.f32.mrb[0].mxu0
    %v2542 = vadd.f32 0.0, %v2541
    %v2543 = vpop.f32.mrb[0].mxu0
    %v2544 = vpop.f32.mrb[0].mxu0
    %2545 = vdwg.mxu0
    %2546 = vmatprep.subr.bf16.mxu0 %v2234
    %2547 = vmatpush1.bf16.msra.mxu0 %v2233
    %2548 = vmatprep.subr.bf16.mxu0 %v2238
    %2549 = vmatpush1.bf16.msra.mxu0 %v2237
    %2550 = vmatprep.subr.bf16.mxu0 %v2242
    %2551 = vmatpush1.bf16.msra.mxu0 %v2241
    %2552 = vmatprep.subr.bf16.mxu0 %v2246
    %2553 = vmatpush1.bf16.msra.mxu0 %v2245
    %2554 = vmatprep.subr.bf16.mxu0 %v2250
    %2555 = vmatpush1.bf16.msra.mxu0 %v2249
    %2556 = vmatprep.subr.bf16.mxu0 %v2254
    %2557 = vmatpush1.bf16.msra.mxu0 %v2253
    %2558 = vmatprep.subr.bf16.mxu0 %v2258
    %2559 = vmatpush1.bf16.msra.mxu0 %v2257
    %2560 = vmatprep.subr.bf16.mxu0 %v2262
    %2561 = vmatpush1.bf16.msra.mxu0 %v2261
    %2562 = vmatprep.subr.bf16.mxu0 %v2266
    %2563 = vmatpush1.bf16.msra.mxu0 %v2265
    %2564 = vmatprep.subr.bf16.mxu0 %v2270
    %2565 = vmatpush1.bf16.msra.mxu0 %v2269
    %2566 = vmatprep.subr.bf16.mxu0 %v2274
    %2567 = vmatpush1.bf16.msra.mxu0 %v2273
    %2568 = vmatprep.subr.bf16.mxu0 %v2278
    %2569 = vmatpush1.bf16.msra.mxu0 %v2277
    %2570 = vmatprep.subr.bf16.mxu0 %v2282
    %2571 = vmatpush1.bf16.msra.mxu0 %v2281
    %2572 = vmatprep.subr.bf16.mxu0 %v2286
    %2573 = vmatpush1.bf16.msra.mxu0 %v2285
    %2574 = vmatprep.subr.bf16.mxu0 %v2290
    %2575 = vmatpush1.bf16.msra.mxu0 %v2289
    %2576 = vmatprep.subr.bf16.mxu0 %v2294
    %2577 = vmatpush1.bf16.msra.mxu0 %v2293
    %2578 = vmatprep.mubr.bf16.mxu0 %v1654
    %2579 = vmatmul.mubr.bf16.gmra.mrb[0].mxu0 %v1653
    %v2580 = vpop.f32.mrb[0].mxu0
    %v2581 = vadd.f32 %v2540, %v2580
    %v2582 = vpop.f32.mrb[0].mxu0
    %v2583 = vadd.f32 %v2542, %v2582
    %v2584 = vpop.f32.mrb[0].mxu0
    %v2585 = vpop.f32.mrb[0].mxu0
    %2586 = vdwg.mxu0
    %v2587 = vsel %vm286, %v2499, 0.0
    %v2588 = vrot.slane %v2587, 4
    %v2589 = vadd.f32 %v2587, %v2588
    %v2590 = vrot.slane %v2589, 2
    %v2591 = vadd.f32 %v2589, %v2590
    %v2592 = vrot.slane %v2591, 1
    %v2593 = vadd.f32 %v2591, %v2592
    %v2594 = vsel %vm286, %v2501, 0.0
    %v2595 = vrot.slane %v2594, 4
    %v2596 = vadd.f32 %v2594, %v2595
    %v2597 = vrot.slane %v2596, 2
    %v2598 = vadd.f32 %v2596, %v2597
    %v2599 = vrot.slane %v2598, 1
    %v2600 = vadd.f32 %v2598, %v2599
    %v2601 = vsel %vm286, %v2581, 0.0
    %v2602 = vrot.slane %v2601, 4
    %v2603 = vadd.f32 %v2601, %v2602
    %v2604 = vrot.slane %v2603, 2
    %v2605 = vadd.f32 %v2603, %v2604
    %v2606 = vrot.slane %v2605, 1
    %v2607 = vadd.f32 %v2605, %v2606
    %v2608 = vsel %vm286, %v2583, 0.0
    %v2609 = vrot.slane %v2608, 4
    %v2610 = vadd.f32 %v2608, %v2609
    %v2611 = vrot.slane %v2610, 2
    %v2612 = vadd.f32 %v2610, %v2611
    %v2613 = vrot.slane %v2612, 1
    %v2614 = vadd.f32 %v2612, %v2613
    %v2615 = vmul.f32 %v2593, 0.5
    %v2616 = vmul.f32 %v2600, 0.5
    %v2617 = vmul.f32 %v2607, 0.5
    %v2618 = vmul.f32 %v2614, 0.5
    %v2619 = vmul.f32 %v2499, %v2499
    %v2620 = vmul.f32 %v2501, %v2501
    %v2621 = vmul.f32 %v2581, %v2581
    %v2622 = vmul.f32 %v2583, %v2583
    %v2623 = vsel %vm286, %v2619, 0.0
    %v2624 = vrot.slane %v2623, 4
    %v2625 = vadd.f32 %v2623, %v2624
    %v2626 = vrot.slane %v2625, 2
    %v2627 = vadd.f32 %v2625, %v2626
    %v2628 = vrot.slane %v2627, 1
    %v2629 = vadd.f32 %v2627, %v2628
    %v2630 = vsel %vm286, %v2620, 0.0
    %v2631 = vrot.slane %v2630, 4
    %v2632 = vadd.f32 %v2630, %v2631
    %v2633 = vrot.slane %v2632, 2
    %v2634 = vadd.f32 %v2632, %v2633
    %v2635 = vrot.slane %v2634, 1
    %v2636 = vadd.f32 %v2634, %v2635
    %v2637 = vsel %vm286, %v2621, 0.0
    %v2638 = vrot.slane %v2637, 4
    %v2639 = vadd.f32 %v2637, %v2638
    %v2640 = vrot.slane %v2639, 2
    %v2641 = vadd.f32 %v2639, %v2640
    %v2642 = vrot.slane %v2641, 1
    %v2643 = vadd.f32 %v2641, %v2642
    %v2644 = vsel %vm286, %v2622, 0.0
    %v2645 = vrot.slane %v2644, 4
    %v2646 = vadd.f32 %v2644, %v2645
    %v2647 = vrot.slane %v2646, 2
    %v2648 = vadd.f32 %v2646, %v2647
    %v2649 = vrot.slane %v2648, 1
    %v2650 = vadd.f32 %v2648, %v2649
    %v2651 = vmul.f32 %v2629, 0.5
    %v2652 = vmul.f32 %v2636, 0.5
    %v2653 = vmul.f32 %v2643, 0.5
    %v2654 = vmul.f32 %v2650, 0.5
    %v2655 = vmul.f32 %v2615, %v2615
    %v2656 = vmul.f32 %v2616, %v2616
    %v2657 = vmul.f32 %v2617, %v2617
    %v2658 = vmul.f32 %v2618, %v2618
    %v2659 = vsub.f32 %v2651, %v2655
    %v2660 = vsub.f32 %v2652, %v2656
    %v2661 = vsub.f32 %v2653, %v2657
    %v2662 = vsub.f32 %v2654, %v2658
    %v2663 = vmax.f32 %v2659, 0.0
    %v2664 = vmax.f32 %v2660, 0.0
    %v2665 = vmax.f32 %v2661, 0.0
    %v2666 = vmax.f32 %v2662, 0.0
    %v2667 = vadd.f32 %v2663, 1e-05
    %v2668 = vadd.f32 %v2664, 1e-05
    %v2669 = vadd.f32 %v2665, 1e-05
    %v2670 = vadd.f32 %v2666, 1e-05
    %v2671 = vrsqrt.pop %v2667
    %v2672 = vrsqrt.pop %v2668
    %v2673 = vrsqrt.pop %v2669
    %v2674 = vrsqrt.pop %v2670
    %v2679 = vcombine.low %v2671, %v2672
    %v2680 = vcombine.low %v2673, %v2674
    %v2682 = vunpack.c.l.s4 1966171168
    %v2683 = vunpack.c.0.s8 %v2682
    %v2684 = vlaneseq
    %v2685 = vshrl.u32 %v2684, 7
    %v2686 = vsub.s32 %v2683, %v2685
    %v2687 = vrot.slane %v2679, %v2686
    %v2689 = vunpack.c.l.s4 1966171168
    %v2690 = vunpack.c.0.s8 %v2689
    %v2691 = vlaneseq
    %v2692 = vshrl.u32 %v2691, 7
    %v2693 = vsub.s32 %v2690, %v2692
    %v2694 = vrot.slane %v2680, %v2693
    %v2695 = vcombine.low %v2687, %v2694
    %v2697 = vunpack.c.l.s4 1966171168
    %v2698 = vunpack.c.0.s8 %v2697
    %v2699 = vlaneseq
    %v2700 = vshrl.u32 %v2699, 7
    %v2701 = vsub.s32 %v2698, %v2700
    %v2702 = vrot.slane %v2695, %v2701
    %v2704 = vmul.f32 %v88, %v2702
    %v2706 = vlaneseq
    %v2707 = vshrl.u32 %v2706, 7
    %v2708 = vsub.s32 0, %v2707
    %v2709 = vrot.slane %v2704, %v2708
    %v2710 = vlaneseq
    %v2711 = vshrl.u32 %v2710, 7
    %v2712 = vsub.s32 1, %v2711
    %v2713 = vrot.slane %v2704, %v2712
    %v2714 = vlaneseq
    %v2715 = vshrl.u32 %v2714, 7
    %v2716 = vsub.s32 2, %v2715
    %v2717 = vrot.slane %v2704, %v2716
    %v2718 = vlaneseq
    %v2719 = vshrl.u32 %v2718, 7
    %v2720 = vsub.s32 3, %v2719
    %v2721 = vrot.slane %v2704, %v2720
    %v2726 = vmul.f32 %v2615, %v2709
    %v2727 = vmul.f32 %v2616, %v2713
    %v2728 = vmul.f32 %v2617, %v2717
    %v2729 = vmul.f32 %v2618, %v2721
    %v2734 = vcombine.low %v2726, %v2727
    %v2735 = vcombine.low %v2728, %v2729
    %v2737 = vunpack.c.l.s4 1966171168
    %v2738 = vunpack.c.0.s8 %v2737
    %v2739 = vlaneseq
    %v2740 = vshrl.u32 %v2739, 7
    %v2741 = vsub.s32 %v2738, %v2740
    %v2742 = vrot.slane %v2734, %v2741
    %v2744 = vunpack.c.l.s4 1966171168
    %v2745 = vunpack.c.0.s8 %v2744
    %v2746 = vlaneseq
    %v2747 = vshrl.u32 %v2746, 7
    %v2748 = vsub.s32 %v2745, %v2747
    %v2749 = vrot.slane %v2735, %v2748
    %v2750 = vcombine.low %v2742, %v2749
    %v2752 = vunpack.c.l.s4 1966171168
    %v2753 = vunpack.c.0.s8 %v2752
    %v2754 = vlaneseq
    %v2755 = vshrl.u32 %v2754, 7
    %v2756 = vsub.s32 %v2753, %v2755
    %v2757 = vrot.slane %v2750, %v2756
    %v2759 = vsub.f32 %v90, %v2757
    %v2760 = vmul.f32 %v2499, %v2709
    %v2761 = vmul.f32 %v2501, %v2713
    %v2762 = vmul.f32 %v2581, %v2717
    %v2763 = vmul.f32 %v2583, %v2721
    %v2765 = vlaneseq
    %v2766 = vshrl.u32 %v2765, 7
    %v2767 = vsub.s32 0, %v2766
    %v2768 = vrot.slane %v2759, %v2767
    %v2769 = vlaneseq
    %v2770 = vshrl.u32 %v2769, 7
    %v2771 = vsub.s32 1, %v2770
    %v2772 = vrot.slane %v2759, %v2771
    %v2773 = vlaneseq
    %v2774 = vshrl.u32 %v2773, 7
    %v2775 = vsub.s32 2, %v2774
    %v2776 = vrot.slane %v2759, %v2775
    %v2777 = vlaneseq
    %v2778 = vshrl.u32 %v2777, 7
    %v2779 = vsub.s32 3, %v2778
    %v2780 = vrot.slane %v2759, %v2779
    %v2785 = vadd.f32 %v2760, %v2768
    %v2786 = vadd.f32 %v2761, %v2772
    %v2787 = vadd.f32 %v2762, %v2776
    %v2788 = vadd.f32 %v2763, %v2780
    %vm2789 = vcmp.gt.f32.partialorder %v2785, 0.0
    %vm2790 = vcmp.gt.f32.partialorder %v2786, 0.0
    %vm2791 = vcmp.gt.f32.partialorder %v2787, 0.0
    %vm2792 = vcmp.gt.f32.partialorder %v2788, 0.0
    %v2793 = vmul.f32 %v2785, 0.01
    %v2794 = vmul.f32 %v2786, 0.01
    %v2795 = vmul.f32 %v2787, 0.01
    %v2796 = vmul.f32 %v2788, 0.01
    %v2797 = vsel %vm2789, %v2785, %v2793
    %v2798 = vsel %vm2790, %v2786, %v2794
    %v2799 = vsel %vm2791, %v2787, %v2795
    %v2800 = vsel %vm2792, %v2788, %v2796
    %v2802 = vlaneseq
    %v2803 = vshrl.u32 %v2802, 7
    %v2804 = vsub.s32 0, %v2803
    %v2805 = vrot.slane %v92, %v2804
    %v2806 = vlaneseq
    %v2807 = vshrl.u32 %v2806, 7
    %v2808 = vsub.s32 1, %v2807
    %v2809 = vrot.slane %v92, %v2808
    %v2810 = vlaneseq
    %v2811 = vshrl.u32 %v2810, 7
    %v2812 = vsub.s32 2, %v2811
    %v2813 = vrot.slane %v92, %v2812
    %v2814 = vlaneseq
    %v2815 = vshrl.u32 %v2814, 7
    %v2816 = vsub.s32 3, %v2815
    %v2817 = vrot.slane %v92, %v2816
    %v2822 = vmul.f32 %v2797, %v2805
    %v2823 = vmul.f32 %v2798, %v2809
    %v2824 = vmul.f32 %v2799, %v2813
    %v2825 = vmul.f32 %v2800, %v2817
    %v2826 = vsel %vm286, %v2822, 0.0
    %v2827 = vsel %vm286, %v2823, 0.0
    %v2828 = vadd.f32 %v2826, %v2827
    %v2829 = vsel %vm286, %v2824, 0.0
    %v2830 = vadd.f32 %v2828, %v2829
    %v2831 = vsel %vm286, %v2825, 0.0
    %v2832 = vadd.f32 %v2830, %v2831
    %2833 = vadd.xlane.f32.xlu0 %v2832
    %v2834 = vpop.xlane.xlu0 %2833
    %v2835 = vadd.f32 %v2834, %v93
    %v2836 = vsub.f32 0.0, %v2835
    %v2837 = vmul.f32 %v2836, 1.442695
    %v2838 = vpow.pop %v2837
    %v2839 = vadd.f32 %v2838, 1.0
    %v2840 = vrcp.pop %v2839
    %v2841 = vmax.f32 %v2840, 0.0
    %v2842 = vmin.f32 %v2841, 1.0
    %vm2843 = vcmask 1024
    %2844 = vst.msk [vmem:[%s6] sm:$0x3] %vm2843, %v2842
    // Predicated region
    $region42: #{dn_dis_one_hot_forward.1} parent=1 // pred_check
      _
    $region43: #{dn_dis_one_hot_forward.1} parent=1 // pred_check_branch
      %2846 = sbr.rel (0) target = $region45
    $region44: #{dn_dis_one_hot_forward.1} parent=1 // pred_region
      _
    $region45: #{dn_dis_one_hot_forward.1} parent=1 // pred_fallthru
      _
    // Predicated region
    $region46: #{dn_dis_one_hot_forward.1} parent=1 // pred_check
      _
    $region47: #{dn_dis_one_hot_forward.1} parent=1 // pred_check_branch
      %2848 = sbr.rel (0) target = $region49
    $region48: #{dn_dis_one_hot_forward.1} parent=1 // pred_region
      _
    $region49: #{dn_dis_one_hot_forward.1} parent=1 // pred_fallthru
      _
    %2849 = vsyncpa [#allocation3], 1
    %2850 = vsyncpa [#allocation5], 1
    %2851 = vsyncpa [#allocation8], 1

</llo_original>
